<compile_context>
chip_gen: v5e
topology: v5e:2x2
jax: 0.10.0
libtpu: 0.0.40
codegen_flags: <defaults>
</compile_context>

<pallas_src>
import math
import functools

import jax
import jax.numpy as jnp
from jax import lax
from jax.experimental import pallas as pl
from jax.experimental.pallas import tpu as pltpu


# ----------------------------- config (small) -----------------------------
BATCH = 2
SEQ = 8
HIDDEN = 32
NUM_HEADS = 4
HEAD_DIM = HIDDEN // NUM_HEADS
INTERMEDIATE = 64
NUM_LAYERS = 2
LN_EPS = 1e-12


# ------------------------------ helpers ------------------------------------
def _layer_norm(x, gamma, beta, eps):
    mu = jnp.mean(x, axis=-1, keepdims=True)
    var = jnp.mean((x - mu) ** 2, axis=-1, keepdims=True)   # biased var (torch)
    return (x - mu) * lax.rsqrt(var + eps) * gamma + beta


def _gelu_exact(x):
    # nn.GELU / BERT "gelu": 0.5 * x * (1 + erf(x / sqrt(2)))
    return 0.5 * x * (1.0 + lax.erf(x * (1.0 / math.sqrt(2.0))))


# ------------------------------ kernel body --------------------------------
def bert_encoder_kernel(x_ref, kv_ref,
                        wqkv_ref, wo_ref, wi_ref, w2_ref,
                        vecs_ref, bi_ref,
                        out_ref, h_ref,
                        *, batch, seq, num_heads, head_dim, eps):
    B, S, NH, DH = batch, seq, num_heads, head_dim
    T = B * S
    H = NH * DH
    layer = pl.program_id(0)

    # First grid step: load the input hidden state into the resident f32 scratch.
    @pl.when(layer == 0)
    def _():
        h_ref[...] = x_ref[...].astype(jnp.float32).reshape(T, H)

    x = h_ref[...]                                        # (T, H) f32 running hidden

    # Per-layer weights (bf16) and packed bias/LN vectors (f32).
    wqkv = wqkv_ref[0]                                    # (H, 3H) bf16, Wq pre-scaled
    wo = wo_ref[0]                                        # (H, H)  bf16
    wi = wi_ref[0]                                        # (H, I)  bf16
    w2 = w2_ref[0]                                        # (I, H)  bf16
    vec = vecs_ref[0]                                     # (9, H)  f32
    bq, bk, bv, bo = vec[0:1], vec[1:2], vec[2:3], vec[3:4]   # bq pre-scaled
    g1, be1 = vec[4:5], vec[5:6]
    b2, g2, be2 = vec[6:7], vec[7:8], vec[8:9]
    bi = bi_ref[0]                                        # (1, I)  f32

    # --- BertSelfAttention: single fused QKV projection (bf16 MXU, f32 acc) ---
    x_bf = x.astype(jnp.bfloat16)
    qkv = jnp.dot(x_bf, wqkv, preferred_element_type=jnp.float32)   # (T, 3H) f32
    q = qkv[:, 0 * H:1 * H] + bq        # already scaled by 1/sqrt(DH)
    k = qkv[:, 1 * H:2 * H] + bk
    v = qkv[:, 2 * H:3 * H] + bv

    # Head split / merge with only lane slices + sublane-aligned reshapes +
    # concatenation (no swapaxes / minor-dim reshapes).  Head-major ordering:
    # group index g = h * B + b.
    def split_heads(t):                 # (T, H) -> (NH*B, S, DH)
        return jnp.concatenate(
            [t[:, h * DH:(h + 1) * DH].reshape(B, S, DH) for h in range(NH)],
            axis=0)

    def merge_heads(t):                 # (NH*B, S, DH) -> (T, H)
        return jnp.concatenate(
            [t[h * B:(h + 1) * B].reshape(T, DH) for h in range(NH)], axis=-1)

    qh = split_heads(q).astype(jnp.bfloat16)
    kh = split_heads(k).astype(jnp.bfloat16)
    vh = split_heads(v).astype(jnp.bfloat16)

    # Batched scaled-dot-product attention over (heads*batch).
    scores = jnp.einsum("gqd,gkd->gqk", qh, kh,
                        preferred_element_type=jnp.float32)          # (NH*B, S, S)

    # Additive mask from compact key_valid: 0 attend, -10000 masked.
    neg = (1.0 - kv_ref[...]) * (-10000.0)                           # (B, S) f32
    neg_g = jnp.tile(neg[:, None, :], (NH, 1, 1))                    # (NH*B, 1, S)
    scores = scores + neg_g

    scores = scores - jnp.max(scores, axis=-1, keepdims=True)
    probs = jnp.exp(scores)
    probs = probs * pl.reciprocal(jnp.sum(probs, axis=-1, keepdims=True),
                                  approx=False)                      # softmax (EUP recip)
    probs = probs.astype(jnp.bfloat16)                               # attn dropout = id
    ctx = jnp.einsum("gqk,gkd->gqd", probs, vh,
                     preferred_element_type=jnp.float32)             # (NH*B, S, DH)
    ctx = merge_heads(ctx)                                           # (T, H)

    # --- BertSelfOutput: dense + residual + LayerNorm ---
    attn = jnp.dot(ctx.astype(jnp.bfloat16), wo,
                   preferred_element_type=jnp.float32) + bo
    h1 = _layer_norm(attn + x, g1, be1, eps)

    # --- BertIntermediate: dense + exact GELU ---
    inter = _gelu_exact(
        jnp.dot(h1.astype(jnp.bfloat16), wi,
                preferred_element_type=jnp.float32) + bi)

    # --- BertOutput: dense + residual + LayerNorm ---
    out = jnp.dot(inter.astype(jnp.bfloat16), w2,
                  preferred_element_type=jnp.float32) + b2
    h_new = _layer_norm(out + h1, g2, be2, eps)

    h_ref[...] = h_new                                   # stays resident in VMEM

    @pl.when(layer == pl.num_programs(0) - 1)
    def _():
        out_ref[...] = h_new.reshape(B, S, H).astype(out_ref.dtype)


# ------------------------------ wrapper -------------------------------------
def bert_encoder(x, key_valid, stacked):
    """x: (B, S, H) f32; key_valid: (B, S) f32 (1=attend, 0=masked);
    stacked: dict of layer-stacked weights (see stack_params)."""
    B, S, H = x.shape
    L = stacked["wqkv"].shape[0]
    I = stacked["wi"].shape[-1]

    kernel = functools.partial(
        bert_encoder_kernel,
        batch=B, seq=S, num_heads=NUM_HEADS, head_dim=H // NUM_HEADS, eps=LN_EPS)

    return pl.pallas_call(
        kernel,
        out_shape=jax.ShapeDtypeStruct((B, S, H), x.dtype),
        grid=(L,),
        in_specs=[
            pl.BlockSpec((B, S, H), lambda l: (0, 0, 0)),       # x (used at layer 0)
            pl.BlockSpec((B, S), lambda l: (0, 0)),             # key_valid mask
            pl.BlockSpec((1, H, 3 * H), lambda l: (l, 0, 0)),   # fused Wqkv (bf16)
            pl.BlockSpec((1, H, H), lambda l: (l, 0, 0)),       # wo
            pl.BlockSpec((1, H, I), lambda l: (l, 0, 0)),       # wi
            pl.BlockSpec((1, I, H), lambda l: (l, 0, 0)),       # w2
            pl.BlockSpec((1, 9, H), lambda l: (l, 0, 0)),       # packed biases + LN params
            pl.BlockSpec((1, 1, I), lambda l: (l, 0, 0)),       # intermediate bias
        ],
        out_specs=pl.BlockSpec((B, S, H), lambda l: (0, 0, 0)),
        scratch_shapes=[pltpu.VMEM((B * S, H), jnp.float32)],   # running hidden state
        compiler_params=pltpu.CompilerParams(
            dimension_semantics=("arbitrary",)),                # layers are sequential
        # TODO(synk): set vmem_limit_bytes explicitly at production shapes.
    )(x, key_valid,
      stacked["wqkv"], stacked["wo"], stacked["wi"], stacked["w2"],
      stacked["vecs"], stacked["bi"])


# ------------------------- parameter construction ---------------------------
def make_layer_params(key):
    ks = jax.random.split(key, 6)
    scale = 0.02

    def lin(k, d_in, d_out):
        kw, kb = jax.random.split(k)
        w = scale * jax.random.normal(kw, (d_in, d_out), jnp.float32)
        b = scale * jax.random.normal(kb, (1, d_out), jnp.float32)
        return w, b

    wq, bq = lin(ks[0], HIDDEN, HIDDEN)
    wk, bk = lin(ks[1], HIDDEN, HIDDEN)
    wv, bv = lin(ks[2], HIDDEN, HIDDEN)
    wo, bo = lin(ks[3], HIDDEN, HIDDEN)
    wi, bi = lin(ks[4], HIDDEN, INTERMEDIATE)
    w2, b2 = lin(ks[5], INTERMEDIATE, HIDDEN)
    g1 = jnp.ones((1, HIDDEN), jnp.float32)
    be1 = jnp.zeros((1, HIDDEN), jnp.float32)
    g2 = jnp.ones((1, HIDDEN), jnp.float32)
    be2 = jnp.zeros((1, HIDDEN), jnp.float32)
    return dict(wq=wq, bq=bq, wk=wk, bk=bk, wv=wv, bv=bv,
                wo=wo, bo=bo, g1=g1, be1=be1,
                wi=wi, bi=bi, w2=w2, b2=b2, g2=g2, be2=be2)


def stack_params(layer_params, head_dim):
    """Stack per-layer params along a leading L axis.  Q/K/V weights are fused
    into one (H, 3H) bf16 matrix with the 1/sqrt(head_dim) scale folded into the
    Q block (and bq); the 9 (1,H) bias / LayerNorm vectors are packed into one
    (L, 9, H) f32 array."""
    s = 1.0 / math.sqrt(head_dim)

    def stk(fn):
        return jnp.stack([fn(p) for p in layer_params], axis=0)

    wqkv = stk(lambda p: jnp.concatenate([p["wq"] * s, p["wk"], p["wv"]], axis=1))
    vecs = stk(lambda p: jnp.concatenate(
        [p["bq"] * s, p["bk"], p["bv"], p["bo"],
         p["g1"], p["be1"], p["b2"], p["g2"], p["be2"]], axis=0))   # (L, 9, H) f32

    return dict(
        wqkv=wqkv.astype(jnp.bfloat16),                 # (L, H, 3H)
        wo=stk(lambda p: p["wo"]).astype(jnp.bfloat16),
        wi=stk(lambda p: p["wi"]).astype(jnp.bfloat16),
        w2=stk(lambda p: p["w2"]).astype(jnp.bfloat16),
        vecs=vecs,
        bi=stk(lambda p: p["bi"]),                      # (L, 1, I) f32
    )


# ----------------------------- pure-JAX reference ---------------------------
def _ref_encoder(x, key_valid, layer_params):
    """Mirrors the PyTorch forward (eval mode) with matched mixed precision
    (bf16 matmul inputs, f32 accumulation / elementwise)."""
    B, S, H = x.shape
    NH, DH = NUM_HEADS, H // NUM_HEADS
    neg = (1.0 - key_valid)[:, None, None, :] * (-10000.0)     # (B,1,1,S)
    scale = 1.0 / math.sqrt(DH)

    def mm(a, w):
        return jnp.dot(a.astype(jnp.bfloat16), w.astype(jnp.bfloat16),
                       preferred_element_type=jnp.float32)

    def ln(t, g, b):
        mu = jnp.mean(t, -1, keepdims=True)
        var = jnp.mean((t - mu) ** 2, -1, keepdims=True)
        return (t - mu) * lax.rsqrt(var + LN_EPS) * g + b

    h = x.astype(jnp.float32)
    for p in layer_params:
        q = mm(h, p["wq"]) + p["bq"]
        k = mm(h, p["wk"]) + p["bk"]
        v = mm(h, p["wv"]) + p["bv"]

        def heads(t):
            return t.reshape(B, S, NH, DH).transpose(0, 2, 1, 3)

        qh, kh, vh = heads(q), heads(k), heads(v)
        sc = jnp.einsum("bnqd,bnkd->bnqk",
                        qh.astype(jnp.bfloat16), kh.astype(jnp.bfloat16),
                        preferred_element_type=jnp.float32) * scale
        sc = sc + neg
        probs = jax.nn.softmax(sc, axis=-1)
        ctx = jnp.einsum("bnqk,bnkd->bnqd",
                         probs.astype(jnp.bfloat16), vh.astype(jnp.bfloat16),
                         preferred_element_type=jnp.float32)
        ctx = ctx.transpose(0, 2, 1, 3).reshape(B, S, H)

        attn = mm(ctx, p["wo"]) + p["bo"]
        h1 = ln(attn + h, p["g1"], p["be1"])
        pre = mm(h1, p["wi"]) + p["bi"]
        inter = 0.5 * pre * (1.0 + lax.erf(pre * (1.0 / math.sqrt(2.0))))
        out2 = mm(inter, p["w2"]) + p["b2"]
        h = ln(out2 + h1, p["g2"], p["be2"])
    return h


# --------------------------------- main -------------------------------------
if __name__ == "__main__":
    key = jax.random.PRNGKey(0)
    k_x, k_params = jax.random.split(key)

    x = jax.random.normal(k_x, (BATCH, SEQ, HIDDEN), jnp.float32)

    # key_valid: 1.0 = attend, 0.0 = masked (BERT padding mask).  Batch 0 attends
    # everywhere, batch 1 masks the last two key positions.  The kernel builds
    # the additive 0 / -10000 mask from this internally.
    key_valid = jnp.ones((BATCH, SEQ), jnp.float32).at[1, -2:].set(0.0)

    layer_params = [make_layer_params(k)
                    for k in jax.random.split(k_params, NUM_LAYERS)]
    stacked = stack_params(layer_params, HEAD_DIM)

    out = jax.block_until_ready(bert_encoder(x, key_valid, stacked))

    ref = _ref_encoder(x, key_valid, layer_params)
    assert out.shape == (BATCH, SEQ, HIDDEN)
    # Tolerance covers bf16 quantization-order differences from folding the
    # 1/sqrt(DH) scale into Wq/bq before the bf16 cast and the fused-QKV matmul,
    # plus minor transcendental / reduction-order differences.
    assert jnp.allclose(out, ref, atol=1e-2, rtol=1e-2), \
        float(jnp.max(jnp.abs(out - ref)))

    print("KERNEL_OK")
</pallas_src>

<mosaic_0001>
module attributes {stable_mosaic.version = 11 : i64} {
  func.func @bert_encoder_kernel(%arg0: i32, %arg1: memref<2x8x32xf32, #tpu.memory_space<vmem>>, %arg2: memref<2x8xf32, #tpu.memory_space<vmem>>, %arg3: memref<1x32x96xbf16, #tpu.memory_space<vmem>>, %arg4: memref<1x32x32xbf16, #tpu.memory_space<vmem>>, %arg5: memref<1x32x64xbf16, #tpu.memory_space<vmem>>, %arg6: memref<1x64x32xbf16, #tpu.memory_space<vmem>>, %arg7: memref<1x9x32xf32, #tpu.memory_space<vmem>>, %arg8: memref<1x1x64xf32, #tpu.memory_space<vmem>>, %arg9: memref<2x8x32xf32, #tpu.memory_space<vmem>>, %arg10: memref<16x32xf32, #tpu.memory_space<vmem>>) attributes {dimension_semantics = [#tpu.dimension_semantics<arbitrary>], iteration_bounds = array<i64: 2>, scalar_prefetch = 0 : i64, scratch_operands = 1 : i64, tpu.core_type = #tpu.core_type<tc>, window_params = [{pipeline_mode = #tpu.pipeline_mode<synchronous>, transform_indices = @transform_0, window_bounds = array<i64: 2, 8, 32>}, {pipeline_mode = #tpu.pipeline_mode<synchronous>, transform_indices = @transform_1, window_bounds = array<i64: 2, 8>}, {transform_indices = @transform_2, window_bounds = array<i64: 1, 32, 96>}, {transform_indices = @transform_3, window_bounds = array<i64: 1, 32, 32>}, {transform_indices = @transform_4, window_bounds = array<i64: 1, 32, 64>}, {transform_indices = @transform_5, window_bounds = array<i64: 1, 64, 32>}, {transform_indices = @transform_6, window_bounds = array<i64: 1, 9, 32>}, {transform_indices = @transform_7, window_bounds = array<i64: 1, 1, 64>}, {pipeline_mode = #tpu.pipeline_mode<synchronous>, transform_indices = @transform_8, window_bounds = array<i64: 2, 8, 32>}]} {
    %c0_i32 = arith.constant 0 : i32
    %0 = arith.cmpi eq, %arg0, %c0_i32 : i32
    %1 = arith.extui %0 : i1 to i32
    %c0_i32_0 = arith.constant 0 : i32
    %2 = arith.cmpi ne, %1, %c0_i32_0 : i32
    scf.if %2 {
      %c0_47 = arith.constant 0 : index
      %c0_48 = arith.constant 0 : index
      %c0_49 = arith.constant 0 : index
      %167 = vector.load %arg1[%c0_47, %c0_48, %c0_49] : memref<2x8x32xf32, #tpu.memory_space<vmem>>, vector<2x8x32xf32>
      %168 = vector.shape_cast %167 : vector<2x8x32xf32> to vector<16x32xf32>
      %c0_50 = arith.constant 0 : index
      %c0_51 = arith.constant 0 : index
      %169 = vector.load %arg10[%c0_50, %c0_51] : memref<16x32xf32, #tpu.memory_space<vmem>>, vector<16x32xf32>
      tpu.vector_store %arg10[%c0_50, %c0_51], %168 {strides = array<i32>} : memref<16x32xf32, #tpu.memory_space<vmem>>, vector<16x32xf32>,
    } else {
    }
    %c0 = arith.constant 0 : index
    %c0_1 = arith.constant 0 : index
    %3 = vector.load %arg10[%c0, %c0_1] : memref<16x32xf32, #tpu.memory_space<vmem>>, vector<16x32xf32>
    %c0_2 = arith.constant 0 : index
    %c0_3 = arith.constant 0 : index
    %c0_4 = arith.constant 0 : index
    %4 = vector.load %arg3[%c0_2, %c0_3, %c0_4] : memref<1x32x96xbf16, #tpu.memory_space<vmem>>, vector<1x32x96xbf16>
    %5 = vector.shape_cast %4 : vector<1x32x96xbf16> to vector<32x96xbf16>
    %c0_5 = arith.constant 0 : index
    %c0_6 = arith.constant 0 : index
    %c0_7 = arith.constant 0 : index
    %6 = vector.load %arg4[%c0_5, %c0_6, %c0_7] : memref<1x32x32xbf16, #tpu.memory_space<vmem>>, vector<1x32x32xbf16>
    %7 = vector.shape_cast %6 : vector<1x32x32xbf16> to vector<32x32xbf16>
    %c0_8 = arith.constant 0 : index
    %c0_9 = arith.constant 0 : index
    %c0_10 = arith.constant 0 : index
    %8 = vector.load %arg5[%c0_8, %c0_9, %c0_10] : memref<1x32x64xbf16, #tpu.memory_space<vmem>>, vector<1x32x64xbf16>
    %9 = vector.shape_cast %8 : vector<1x32x64xbf16> to vector<32x64xbf16>
    %c0_11 = arith.constant 0 : index
    %c0_12 = arith.constant 0 : index
    %c0_13 = arith.constant 0 : index
    %10 = vector.load %arg6[%c0_11, %c0_12, %c0_13] : memref<1x64x32xbf16, #tpu.memory_space<vmem>>, vector<1x64x32xbf16>
    %11 = vector.shape_cast %10 : vector<1x64x32xbf16> to vector<64x32xbf16>
    %c0_14 = arith.constant 0 : index
    %c0_15 = arith.constant 0 : index
    %c0_16 = arith.constant 0 : index
    %12 = vector.load %arg7[%c0_14, %c0_15, %c0_16] : memref<1x9x32xf32, #tpu.memory_space<vmem>>, vector<1x9x32xf32>
    %13 = vector.shape_cast %12 : vector<1x9x32xf32> to vector<9x32xf32>
    %14 = vector.extract_strided_slice %13 {offsets = [0, 0], sizes = [1, 32], strides = [1, 1]} : vector<9x32xf32> to vector<1x32xf32>
    %15 = vector.extract_strided_slice %13 {offsets = [1, 0], sizes = [1, 32], strides = [1, 1]} : vector<9x32xf32> to vector<1x32xf32>
    %16 = vector.extract_strided_slice %13 {offsets = [2, 0], sizes = [1, 32], strides = [1, 1]} : vector<9x32xf32> to vector<1x32xf32>
    %17 = vector.extract_strided_slice %13 {offsets = [3, 0], sizes = [1, 32], strides = [1, 1]} : vector<9x32xf32> to vector<1x32xf32>
    %18 = vector.extract_strided_slice %13 {offsets = [4, 0], sizes = [1, 32], strides = [1, 1]} : vector<9x32xf32> to vector<1x32xf32>
    %19 = vector.extract_strided_slice %13 {offsets = [5, 0], sizes = [1, 32], strides = [1, 1]} : vector<9x32xf32> to vector<1x32xf32>
    %20 = vector.extract_strided_slice %13 {offsets = [6, 0], sizes = [1, 32], strides = [1, 1]} : vector<9x32xf32> to vector<1x32xf32>
    %21 = vector.extract_strided_slice %13 {offsets = [7, 0], sizes = [1, 32], strides = [1, 1]} : vector<9x32xf32> to vector<1x32xf32>
    %22 = vector.extract_strided_slice %13 {offsets = [8, 0], sizes = [1, 32], strides = [1, 1]} : vector<9x32xf32> to vector<1x32xf32>
    %c0_17 = arith.constant 0 : index
    %c0_18 = arith.constant 0 : index
    %c0_19 = arith.constant 0 : index
    %23 = vector.load %arg8[%c0_17, %c0_18, %c0_19] : memref<1x1x64xf32, #tpu.memory_space<vmem>>, vector<1x1x64xf32>
    %24 = vector.shape_cast %23 : vector<1x1x64xf32> to vector<1x64xf32>
    %25 = arith.truncf %3 : vector<16x32xf32> to vector<16x32xbf16>
    %cst = arith.constant dense<0.000000e+00> : vector<16x96xf32>
    %26 = tpu.matmul %25, %5, %cst {dimension_numbers = #tpu.dot_dimension_numbers<[1], [0], [0], [1], [0, 0, 1, 1], [], []>} : vector<16x32xbf16>, vector<32x96xbf16>, vector<16x96xf32> -> vector<16x96xf32>
    %27 = vector.extract_strided_slice %26 {offsets = [0, 0], sizes = [16, 32], strides = [1, 1]} : vector<16x96xf32> to vector<16x32xf32>
    %28 = vector.broadcast %14 : vector<1x32xf32> to vector<16x32xf32>
    %29 = arith.addf %27, %28 : vector<16x32xf32>
    %30 = vector.extract_strided_slice %26 {offsets = [0, 32], sizes = [16, 32], strides = [1, 1]} : vector<16x96xf32> to vector<16x32xf32>
    %31 = vector.broadcast %15 : vector<1x32xf32> to vector<16x32xf32>
    %32 = arith.addf %30, %31 : vector<16x32xf32>
    %33 = vector.extract_strided_slice %26 {offsets = [0, 64], sizes = [16, 32], strides = [1, 1]} : vector<16x96xf32> to vector<16x32xf32>
    %34 = vector.broadcast %16 : vector<1x32xf32> to vector<16x32xf32>
    %35 = arith.addf %33, %34 : vector<16x32xf32>
    %36 = vector.extract_strided_slice %29 {offsets = [0, 0], sizes = [16, 8], strides = [1, 1]} : vector<16x32xf32> to vector<16x8xf32>
    %37 = vector.shape_cast %36 : vector<16x8xf32> to vector<2x8x8xf32>
    %38 = vector.extract_strided_slice %29 {offsets = [0, 8], sizes = [16, 8], strides = [1, 1]} : vector<16x32xf32> to vector<16x8xf32>
    %39 = vector.shape_cast %38 : vector<16x8xf32> to vector<2x8x8xf32>
    %40 = vector.extract_strided_slice %29 {offsets = [0, 16], sizes = [16, 8], strides = [1, 1]} : vector<16x32xf32> to vector<16x8xf32>
    %41 = vector.shape_cast %40 : vector<16x8xf32> to vector<2x8x8xf32>
    %42 = vector.extract_strided_slice %29 {offsets = [0, 24], sizes = [16, 8], strides = [1, 1]} : vector<16x32xf32> to vector<16x8xf32>
    %43 = vector.shape_cast %42 : vector<16x8xf32> to vector<2x8x8xf32>
    %44 = tpu.concatenate %37, %39, %41, %43 in 0 : vector<2x8x8xf32>, vector<2x8x8xf32>, vector<2x8x8xf32>, vector<2x8x8xf32> -> vector<8x8x8xf32>
    %45 = arith.truncf %44 : vector<8x8x8xf32> to vector<8x8x8xbf16>
    %46 = vector.extract_strided_slice %32 {offsets = [0, 0], sizes = [16, 8], strides = [1, 1]} : vector<16x32xf32> to vector<16x8xf32>
    %47 = vector.shape_cast %46 : vector<16x8xf32> to vector<2x8x8xf32>
    %48 = vector.extract_strided_slice %32 {offsets = [0, 8], sizes = [16, 8], strides = [1, 1]} : vector<16x32xf32> to vector<16x8xf32>
    %49 = vector.shape_cast %48 : vector<16x8xf32> to vector<2x8x8xf32>
    %50 = vector.extract_strided_slice %32 {offsets = [0, 16], sizes = [16, 8], strides = [1, 1]} : vector<16x32xf32> to vector<16x8xf32>
    %51 = vector.shape_cast %50 : vector<16x8xf32> to vector<2x8x8xf32>
    %52 = vector.extract_strided_slice %32 {offsets = [0, 24], sizes = [16, 8], strides = [1, 1]} : vector<16x32xf32> to vector<16x8xf32>
    %53 = vector.shape_cast %52 : vector<16x8xf32> to vector<2x8x8xf32>
    %54 = tpu.concatenate %47, %49, %51, %53 in 0 : vector<2x8x8xf32>, vector<2x8x8xf32>, vector<2x8x8xf32>, vector<2x8x8xf32> -> vector<8x8x8xf32>
    %55 = arith.truncf %54 : vector<8x8x8xf32> to vector<8x8x8xbf16>
    %56 = vector.extract_strided_slice %35 {offsets = [0, 0], sizes = [16, 8], strides = [1, 1]} : vector<16x32xf32> to vector<16x8xf32>
    %57 = vector.shape_cast %56 : vector<16x8xf32> to vector<2x8x8xf32>
    %58 = vector.extract_strided_slice %35 {offsets = [0, 8], sizes = [16, 8], strides = [1, 1]} : vector<16x32xf32> to vector<16x8xf32>
    %59 = vector.shape_cast %58 : vector<16x8xf32> to vector<2x8x8xf32>
    %60 = vector.extract_strided_slice %35 {offsets = [0, 16], sizes = [16, 8], strides = [1, 1]} : vector<16x32xf32> to vector<16x8xf32>
    %61 = vector.shape_cast %60 : vector<16x8xf32> to vector<2x8x8xf32>
    %62 = vector.extract_strided_slice %35 {offsets = [0, 24], sizes = [16, 8], strides = [1, 1]} : vector<16x32xf32> to vector<16x8xf32>
    %63 = vector.shape_cast %62 : vector<16x8xf32> to vector<2x8x8xf32>
    %64 = tpu.concatenate %57, %59, %61, %63 in 0 : vector<2x8x8xf32>, vector<2x8x8xf32>, vector<2x8x8xf32>, vector<2x8x8xf32> -> vector<8x8x8xf32>
    %65 = arith.truncf %64 : vector<8x8x8xf32> to vector<8x8x8xbf16>
    "tpu.trace_start"() <{level = 10 : i32, message = "gqd,gkd->gqk"}> : () -> ()
    %cst_20 = arith.constant dense<0.000000e+00> : vector<8x8x8xf32>
    %66 = tpu.matmul %45, %55, %cst_20 {dimension_numbers = #tpu.dot_dimension_numbers<[2], [2], [1], [1], [0, 0, 0, 1, 1, 1], [0], [0]>} : vector<8x8x8xbf16>, vector<8x8x8xbf16>, vector<8x8x8xf32> -> vector<8x8x8xf32>
    "tpu.trace_stop"() : () -> ()
    %c0_21 = arith.constant 0 : index
    %c0_22 = arith.constant 0 : index
    %67 = vector.load %arg2[%c0_21, %c0_22] : memref<2x8xf32, #tpu.memory_space<vmem>>, vector<2x8xf32>
    %cst_23 = arith.constant 1.000000e+00 : f32
    %68 = vector.broadcast %cst_23 : f32 to vector<2x8xf32>
    %69 = arith.subf %68, %67 : vector<2x8xf32>
    %cst_24 = arith.constant -1.000000e+04 : f32
    %70 = vector.broadcast %cst_24 : f32 to vector<2x8xf32>
    %71 = arith.mulf %69, %70 : vector<2x8xf32>
    %72 = vector.shape_cast %71 : vector<2x8xf32> to vector<2x1x8xf32>
    %73 = tpu.concatenate %72, %72, %72, %72 in 0 : vector<2x1x8xf32>, vector<2x1x8xf32>, vector<2x1x8xf32>, vector<2x1x8xf32> -> vector<8x1x8xf32>
    %74 = vector.broadcast %73 : vector<8x1x8xf32> to vector<8x8x8xf32>
    %75 = arith.addf %66, %74 : vector<8x8x8xf32>
    %cst_25 = arith.constant dense<0xFF800000> : vector<8x8xf32>
    %76 = vector.multi_reduction <maximumf>, %75, %cst_25 [2] : vector<8x8x8xf32> to vector<8x8xf32>
    %77 = vector.shape_cast %76 : vector<8x8xf32> to vector<8x8x1xf32>
    %78 = vector.broadcast %77 : vector<8x8x1xf32> to vector<8x8x8xf32>
    %79 = arith.subf %75, %78 : vector<8x8x8xf32>
    %80 = math.exp %79 : vector<8x8x8xf32>
    %cst_26 = arith.constant dense<0.000000e+00> : vector<8x8xf32>
    %81 = vector.multi_reduction <add>, %80, %cst_26 [2] : vector<8x8x8xf32> to vector<8x8xf32>
    %82 = vector.shape_cast %81 : vector<8x8xf32> to vector<8x8x1xf32>
    %83 = tpu.reciprocal %82 : vector<8x8x1xf32> -> vector<8x8x1xf32>
    %84 = vector.broadcast %83 : vector<8x8x1xf32> to vector<8x8x8xf32>
    %85 = arith.mulf %80, %84 : vector<8x8x8xf32>
    %86 = arith.truncf %85 : vector<8x8x8xf32> to vector<8x8x8xbf16>
    "tpu.trace_start"() <{level = 10 : i32, message = "gqk,gkd->gqd"}> : () -> ()
    %cst_27 = arith.constant dense<0.000000e+00> : vector<8x8x8xf32>
    %87 = tpu.matmul %86, %65, %cst_27 {dimension_numbers = #tpu.dot_dimension_numbers<[2], [1], [1], [2], [0, 0, 0, 1, 1, 2], [0], [0]>} : vector<8x8x8xbf16>, vector<8x8x8xbf16>, vector<8x8x8xf32> -> vector<8x8x8xf32>
    "tpu.trace_stop"() : () -> ()
    %88 = vector.extract_strided_slice %87 {offsets = [0, 0, 0], sizes = [2, 8, 8], strides = [1, 1, 1]} : vector<8x8x8xf32> to vector<2x8x8xf32>
    %89 = vector.shape_cast %88 : vector<2x8x8xf32> to vector<16x8xf32>
    %90 = vector.extract_strided_slice %87 {offsets = [2, 0, 0], sizes = [2, 8, 8], strides = [1, 1, 1]} : vector<8x8x8xf32> to vector<2x8x8xf32>
    %91 = vector.shape_cast %90 : vector<2x8x8xf32> to vector<16x8xf32>
    %92 = vector.extract_strided_slice %87 {offsets = [4, 0, 0], sizes = [2, 8, 8], strides = [1, 1, 1]} : vector<8x8x8xf32> to vector<2x8x8xf32>
    %93 = vector.shape_cast %92 : vector<2x8x8xf32> to vector<16x8xf32>
    %94 = vector.extract_strided_slice %87 {offsets = [6, 0, 0], sizes = [2, 8, 8], strides = [1, 1, 1]} : vector<8x8x8xf32> to vector<2x8x8xf32>
    %95 = vector.shape_cast %94 : vector<2x8x8xf32> to vector<16x8xf32>
    %96 = tpu.concatenate %89, %91, %93, %95 in 1 : vector<16x8xf32>, vector<16x8xf32>, vector<16x8xf32>, vector<16x8xf32> -> vector<16x32xf32>
    %97 = arith.truncf %96 : vector<16x32xf32> to vector<16x32xbf16>
    %cst_28 = arith.constant dense<0.000000e+00> : vector<16x32xf32>
    %98 = tpu.matmul %97, %7, %cst_28 {dimension_numbers = #tpu.dot_dimension_numbers<[1], [0], [0], [1], [0, 0, 1, 1], [], []>} : vector<16x32xbf16>, vector<32x32xbf16>, vector<16x32xf32> -> vector<16x32xf32>
    %99 = vector.broadcast %17 : vector<1x32xf32> to vector<16x32xf32>
    %100 = arith.addf %98, %99 : vector<16x32xf32>
    %101 = arith.addf %100, %3 : vector<16x32xf32>
    %cst_29 = arith.constant dense<0.000000e+00> : vector<16xf32>
    %102 = vector.multi_reduction <add>, %101, %cst_29 [1] : vector<16x32xf32> to vector<16xf32>
    %103 = vector.shape_cast %102 : vector<16xf32> to vector<16x1xf32>
    %cst_30 = arith.constant 3.200000e+01 : f32
    %104 = vector.broadcast %cst_30 : f32 to vector<16x1xf32>
    %105 = arith.divf %103, %104 : vector<16x1xf32>
    %106 = vector.broadcast %105 : vector<16x1xf32> to vector<16x32xf32>
    %107 = arith.subf %101, %106 : vector<16x32xf32>
    %108 = arith.mulf %107, %107 : vector<16x32xf32>
    %cst_31 = arith.constant dense<0.000000e+00> : vector<16xf32>
    %109 = vector.multi_reduction <add>, %108, %cst_31 [1] : vector<16x32xf32> to vector<16xf32>
    %110 = vector.shape_cast %109 : vector<16xf32> to vector<16x1xf32>
    %cst_32 = arith.constant 3.200000e+01 : f32
    %111 = vector.broadcast %cst_32 : f32 to vector<16x1xf32>
    %112 = arith.divf %110, %111 : vector<16x1xf32>
    %113 = vector.broadcast %105 : vector<16x1xf32> to vector<16x32xf32>
    %114 = arith.subf %101, %113 : vector<16x32xf32>
    %cst_33 = arith.constant 9.99999996E-13 : f32
    %115 = vector.broadcast %cst_33 : f32 to vector<16x1xf32>
    %116 = arith.addf %112, %115 : vector<16x1xf32>
    %117 = math.rsqrt %116 : vector<16x1xf32>
    %118 = vector.broadcast %117 : vector<16x1xf32> to vector<16x32xf32>
    %119 = arith.mulf %114, %118 : vector<16x32xf32>
    %120 = vector.broadcast %18 : vector<1x32xf32> to vector<16x32xf32>
    %121 = arith.mulf %119, %120 : vector<16x32xf32>
    %122 = vector.broadcast %19 : vector<1x32xf32> to vector<16x32xf32>
    %123 = arith.addf %121, %122 : vector<16x32xf32>
    %124 = arith.truncf %123 : vector<16x32xf32> to vector<16x32xbf16>
    %cst_34 = arith.constant dense<0.000000e+00> : vector<16x64xf32>
    %125 = tpu.matmul %124, %9, %cst_34 {dimension_numbers = #tpu.dot_dimension_numbers<[1], [0], [0], [1], [0, 0, 1, 1], [], []>} : vector<16x32xbf16>, vector<32x64xbf16>, vector<16x64xf32> -> vector<16x64xf32>
    %126 = vector.broadcast %24 : vector<1x64xf32> to vector<16x64xf32>
    %127 = arith.addf %125, %126 : vector<16x64xf32>
    %cst_35 = arith.constant 5.000000e-01 : f32
    %128 = vector.broadcast %cst_35 : f32 to vector<16x64xf32>
    %129 = arith.mulf %128, %127 : vector<16x64xf32>
    %cst_36 = arith.constant 0.707106769 : f32
    %130 = vector.broadcast %cst_36 : f32 to vector<16x64xf32>
    %131 = arith.mulf %127, %130 : vector<16x64xf32>
    %132 = math.erf %131 : vector<16x64xf32>
    %cst_37 = arith.constant 1.000000e+00 : f32
    %133 = vector.broadcast %cst_37 : f32 to vector<16x64xf32>
    %134 = arith.addf %133, %132 : vector<16x64xf32>
    %135 = arith.mulf %129, %134 : vector<16x64xf32>
    %136 = arith.truncf %135 : vector<16x64xf32> to vector<16x64xbf16>
    %cst_38 = arith.constant dense<0.000000e+00> : vector<16x32xf32>
    %137 = tpu.matmul %136, %11, %cst_38 {dimension_numbers = #tpu.dot_dimension_numbers<[1], [0], [0], [1], [0, 0, 1, 1], [], []>} : vector<16x64xbf16>, vector<64x32xbf16>, vector<16x32xf32> -> vector<16x32xf32>
    %138 = vector.broadcast %20 : vector<1x32xf32> to vector<16x32xf32>
    %139 = arith.addf %137, %138 : vector<16x32xf32>
    %140 = arith.addf %139, %123 : vector<16x32xf32>
    %cst_39 = arith.constant dense<0.000000e+00> : vector<16xf32>
    %141 = vector.multi_reduction <add>, %140, %cst_39 [1] : vector<16x32xf32> to vector<16xf32>
    %142 = vector.shape_cast %141 : vector<16xf32> to vector<16x1xf32>
    %cst_40 = arith.constant 3.200000e+01 : f32
    %143 = vector.broadcast %cst_40 : f32 to vector<16x1xf32>
    %144 = arith.divf %142, %143 : vector<16x1xf32>
    %145 = vector.broadcast %144 : vector<16x1xf32> to vector<16x32xf32>
    %146 = arith.subf %140, %145 : vector<16x32xf32>
    %147 = arith.mulf %146, %146 : vector<16x32xf32>
    %cst_41 = arith.constant dense<0.000000e+00> : vector<16xf32>
    %148 = vector.multi_reduction <add>, %147, %cst_41 [1] : vector<16x32xf32> to vector<16xf32>
    %149 = vector.shape_cast %148 : vector<16xf32> to vector<16x1xf32>
    %cst_42 = arith.constant 3.200000e+01 : f32
    %150 = vector.broadcast %cst_42 : f32 to vector<16x1xf32>
    %151 = arith.divf %149, %150 : vector<16x1xf32>
    %152 = vector.broadcast %144 : vector<16x1xf32> to vector<16x32xf32>
    %153 = arith.subf %140, %152 : vector<16x32xf32>
    %cst_43 = arith.constant 9.99999996E-13 : f32
    %154 = vector.broadcast %cst_43 : f32 to vector<16x1xf32>
    %155 = arith.addf %151, %154 : vector<16x1xf32>
    %156 = math.rsqrt %155 : vector<16x1xf32>
    %157 = vector.broadcast %156 : vector<16x1xf32> to vector<16x32xf32>
    %158 = arith.mulf %153, %157 : vector<16x32xf32>
    %159 = vector.broadcast %21 : vector<1x32xf32> to vector<16x32xf32>
    %160 = arith.mulf %158, %159 : vector<16x32xf32>
    %161 = vector.broadcast %22 : vector<1x32xf32> to vector<16x32xf32>
    %162 = arith.addf %160, %161 : vector<16x32xf32>
    %c0_44 = arith.constant 0 : index
    %c0_45 = arith.constant 0 : index
    %163 = vector.load %arg10[%c0_44, %c0_45] : memref<16x32xf32, #tpu.memory_space<vmem>>, vector<16x32xf32>
    tpu.vector_store %arg10[%c0_44, %c0_45], %162 {strides = array<i32>} : memref<16x32xf32, #tpu.memory_space<vmem>>, vector<16x32xf32>,
    %c1_i32 = arith.constant 1 : i32
    %164 = arith.cmpi eq, %arg0, %c1_i32 : i32
    %165 = arith.extui %164 : i1 to i32
    %c0_i32_46 = arith.constant 0 : i32
    %166 = arith.cmpi ne, %165, %c0_i32_46 : i32
    scf.if %166 {
      %167 = vector.shape_cast %162 : vector<16x32xf32> to vector<2x8x32xf32>
      %c0_47 = arith.constant 0 : index
      %c0_48 = arith.constant 0 : index
      %c0_49 = arith.constant 0 : index
      %168 = vector.load %arg9[%c0_47, %c0_48, %c0_49] : memref<2x8x32xf32, #tpu.memory_space<vmem>>, vector<2x8x32xf32>
      tpu.vector_store %arg9[%c0_47, %c0_48, %c0_49], %167 {strides = array<i32>} : memref<2x8x32xf32, #tpu.memory_space<vmem>>, vector<2x8x32xf32>,
    } else {
    }
    return
  }
  func.func @transform_0(%arg0: i32) -> (i32, i32, i32) {
    %c0_i32 = arith.constant 0 : i32
    %c0_i32_0 = arith.constant 0 : i32
    %c0_i32_1 = arith.constant 0 : i32
    %c0_i32_2 = arith.constant 0 : i32
    return %c0_i32, %c0_i32_0, %c0_i32_1 : i32, i32, i32
  }
  func.func @transform_1(%arg0: i32) -> (i32, i32) {
    %c0_i32 = arith.constant 0 : i32
    %c0_i32_0 = arith.constant 0 : i32
    %c0_i32_1 = arith.constant 0 : i32
    return %c0_i32, %c0_i32_0 : i32, i32
  }
  func.func @transform_2(%arg0: i32) -> (i32, i32, i32) {
    %c0_i32 = arith.constant 0 : i32
    %c0_i32_0 = arith.constant 0 : i32
    %c0_i32_1 = arith.constant 0 : i32
    return %arg0, %c0_i32, %c0_i32_0 : i32, i32, i32
  }
  func.func @transform_3(%arg0: i32) -> (i32, i32, i32) {
    %c0_i32 = arith.constant 0 : i32
    %c0_i32_0 = arith.constant 0 : i32
    %c0_i32_1 = arith.constant 0 : i32
    return %arg0, %c0_i32, %c0_i32_0 : i32, i32, i32
  }
  func.func @transform_4(%arg0: i32) -> (i32, i32, i32) {
    %c0_i32 = arith.constant 0 : i32
    %c0_i32_0 = arith.constant 0 : i32
    %c0_i32_1 = arith.constant 0 : i32
    return %arg0, %c0_i32, %c0_i32_0 : i32, i32, i32
  }
  func.func @transform_5(%arg0: i32) -> (i32, i32, i32) {
    %c0_i32 = arith.constant 0 : i32
    %c0_i32_0 = arith.constant 0 : i32
    %c0_i32_1 = arith.constant 0 : i32
    return %arg0, %c0_i32, %c0_i32_0 : i32, i32, i32
  }
  func.func @transform_6(%arg0: i32) -> (i32, i32, i32) {
    %c0_i32 = arith.constant 0 : i32
    %c0_i32_0 = arith.constant 0 : i32
    %c0_i32_1 = arith.constant 0 : i32
    return %arg0, %c0_i32, %c0_i32_0 : i32, i32, i32
  }
  func.func @transform_7(%arg0: i32) -> (i32, i32, i32) {
    %c0_i32 = arith.constant 0 : i32
    %c0_i32_0 = arith.constant 0 : i32
    %c0_i32_1 = arith.constant 0 : i32
    return %arg0, %c0_i32, %c0_i32_0 : i32, i32, i32
  }
  func.func @transform_8(%arg0: i32) -> (i32, i32, i32) {
    %c0_i32 = arith.constant 0 : i32
    %c0_i32_0 = arith.constant 0 : i32
    %c0_i32_1 = arith.constant 0 : i32
    %c0_i32_2 = arith.constant 0 : i32
    return %c0_i32, %c0_i32_0, %c0_i32_1 : i32, i32, i32
  }
}

</mosaic_0001>

<llo_original>
// kernel: tpu_custom_call.1
$region0: #{tpu_custom_call.1}
  #allocation0 [shape = 'u32[]', space=smem, size = 0x4, offset = 0x4, fixed_abs, tag = 'smem constant byte address 0x4 - core index']
  #allocation1 [shape = 'u32[72,128]{1,0:T(1,128)}', space=vmem, size = 0x9000, scoped, tag = 'internal scratch']
  #allocation2 [shape = 'f32[16,32]{1,0:T(8,128)}', space=vmem, size = 0x2000, scoped, tag = 'scratch operand']
  %s0 = inlined_call_operand.vmem [shape: f32[2,8,32], index: 0, kind: input, shape index: {}]
  %s1 = inlined_call_operand.vmem [shape: f32[2,8], index: 1, kind: input, shape index: {}]
  %s2 = inlined_call_operand.vmem [shape: bf16[2,32,96], index: 2, kind: input, shape index: {}]
  %s3 = inlined_call_operand.vmem [shape: bf16[2,32,32], index: 3, kind: input, shape index: {}]
  %s4 = inlined_call_operand.vmem [shape: bf16[2,32,64], index: 4, kind: input, shape index: {}]
  %s5 = inlined_call_operand.vmem [shape: bf16[2,64,32], index: 5, kind: input, shape index: {}]
  %s6 = inlined_call_operand.vmem [shape: f32[2,9,32], index: 6, kind: input, shape index: {}]
  %s7 = inlined_call_operand.vmem [shape: f32[2,1,64], index: 7, kind: input, shape index: {}]
  %s8 = inlined_call_operand.hbm [shape: f32[2,8,32], index: 8, kind: output, shape index: {}]
  %s9 = sld [smem:[#allocation0]]
  $region73: #{tpu_custom_call.1} parent=0
    _
  %s11 = ssub.s32 1, %s9
  %s12 = scalar_select 0, %s11, %s9
  $region1: #{tpu_custom_call.1} parent=0
    #allocation3 [shape = 'u8[8192]{0}', space=vmem, size = 0x2000, scoped, tag = 'output window, operand 0, single buffered']
    #allocation4 [shape = 's32[2]{0}', space=sflag, size = 0x8, scoped, tag = 'scoped memory for tpu_custom_call.1']
    %13 = vsyncpa [#allocation4], 0
    loop: start=0, step=1, limit=4
    $region2: #{tpu_custom_call.1} parent=1 // loop_pre_header
      _
    $region3: #{tpu_custom_call.1} parent=1 // loop_header
      %s15 = sphi 0, %s19
      %p16 = scmp.ge.s32.totalorder %s15, 4
      %s23 = sphi 0, %s23
      %s25 = sphi 0, %s23
      %s26 = sphi 0, %s25
      %s40 = sphi 0, %s26
      %s44 = sphi 0, %s44
      %s46 = sphi 0, %s44
      %s47 = sphi 0, %s46
      %s61 = sphi 0, %s47
      %s67 = sphi 0, %s69
      %s70 = sphi 0, %s67
      %s71 = sphi 0, %s70
      %s87 = sphi 0, %s71
      %s93 = sphi 0, %s95
      %s96 = sphi 0, %s93
      %s97 = sphi 0, %s96
      %s113 = sphi 0, %s97
      %s119 = sphi 0, %s121
      %s122 = sphi 0, %s119
      %s123 = sphi 0, %s122
      %s139 = sphi 0, %s123
      %s145 = sphi 0, %s147
      %s148 = sphi 0, %s145
      %s149 = sphi 0, %s148
      %s165 = sphi 0, %s149
      %s171 = sphi 0, %s173
      %s174 = sphi 0, %s171
      %s175 = sphi 0, %s174
      %s191 = sphi 0, %s175
      %s197 = sphi 0, %s199
      %s200 = sphi 0, %s197
      %s201 = sphi 0, %s200
      %s217 = sphi 0, %s201
      %s221 = sphi 0, %s221
      %s223 = sphi 0, %s221
      %s224 = sphi 0, %s223
      %s238 = sphi 0, %s224
    $region4: #{tpu_custom_call.1} parent=1 // loop_header_branch
      %18 = sbr.rel (%p16) target = $region8
    $region5: #{tpu_custom_call.1} parent=1 // loop_body
      %s20 = ssub.s32 %s15, 1
      %s21 = ssub.s32 %s15, 2
      %s22 = sadd.s32 %s15, 1
      %s24 = sadd.s32 %s23, 1
      %p27 = scmp.eq.s32.totalorder %s15, 1
      %p28 = scmp.ne.s32.totalorder %s23, %s25
      %p29 = scmp.eq.s32.totalorder %s15, 0
      %p30 = por %p28, %p29
      %p31 = scmp.ne.s32.totalorder %s23, %s25
      %p32 = scmp.eq.s32.totalorder %s20, 1
      %p33 = por %p31, %p32
      %p34 = scmp.ne.s32.totalorder %s25, %s26
      %p35 = scmp.eq.s32.totalorder %s20, 0
      %p36 = por %p34, %p35
      %p37 = scmp.ne.s32.totalorder %s25, %s26
      %p38 = scmp.eq.s32.totalorder %s21, 1
      %p39 = por %p37, %p38
      %p41 = scmp.ne.s32.totalorder %s26, %s40
      %p42 = scmp.eq.s32.totalorder %s21, 0
      %p43 = por %p41, %p42
      %s45 = sadd.s32 %s44, 1
      %p48 = scmp.eq.s32.totalorder %s15, 1
      %p49 = scmp.ne.s32.totalorder %s44, %s46
      %p50 = scmp.eq.s32.totalorder %s15, 0
      %p51 = por %p49, %p50
      %p52 = scmp.ne.s32.totalorder %s44, %s46
      %p53 = scmp.eq.s32.totalorder %s20, 1
      %p54 = por %p52, %p53
      %p55 = scmp.ne.s32.totalorder %s46, %s47
      %p56 = scmp.eq.s32.totalorder %s20, 0
      %p57 = por %p55, %p56
      %p58 = scmp.ne.s32.totalorder %s46, %s47
      %p59 = scmp.eq.s32.totalorder %s21, 1
      %p60 = por %p58, %p59
      %p62 = scmp.ne.s32.totalorder %s47, %s61
      %p63 = scmp.eq.s32.totalorder %s21, 0
      %p64 = por %p62, %p63
      %s65 = ssub.s32 %s15, %s22
      %p66 = scmp.eq.s32.totalorder %s65, 0
      %s68 = sadd.s32 %s67, 1
      %s69 = scalar_select %p66, %s67, %s68
      %p72 = pneg %p66
      %p73 = scmp.eq.s32.totalorder %s15, 1
      %p74 = por %p72, %p73
      %p75 = scmp.ne.s32.totalorder %s67, %s70
      %p76 = scmp.eq.s32.totalorder %s15, 0
      %p77 = por %p75, %p76
      %p78 = scmp.ne.s32.totalorder %s67, %s70
      %p79 = scmp.eq.s32.totalorder %s20, 1
      %p80 = por %p78, %p79
      %p81 = scmp.ne.s32.totalorder %s70, %s71
      %p82 = scmp.eq.s32.totalorder %s20, 0
      %p83 = por %p81, %p82
      %p84 = scmp.ne.s32.totalorder %s70, %s71
      %p85 = scmp.eq.s32.totalorder %s21, 1
      %p86 = por %p84, %p85
      %p88 = scmp.ne.s32.totalorder %s71, %s87
      %p89 = scmp.eq.s32.totalorder %s21, 0
      %p90 = por %p88, %p89
      %s91 = ssub.s32 %s15, %s22
      %p92 = scmp.eq.s32.totalorder %s91, 0
      %s94 = sadd.s32 %s93, 1
      %s95 = scalar_select %p92, %s93, %s94
      %p98 = pneg %p92
      %p99 = scmp.eq.s32.totalorder %s15, 1
      %p100 = por %p98, %p99
      %p101 = scmp.ne.s32.totalorder %s93, %s96
      %p102 = scmp.eq.s32.totalorder %s15, 0
      %p103 = por %p101, %p102
      %p104 = scmp.ne.s32.totalorder %s93, %s96
      %p105 = scmp.eq.s32.totalorder %s20, 1
      %p106 = por %p104, %p105
      %p107 = scmp.ne.s32.totalorder %s96, %s97
      %p108 = scmp.eq.s32.totalorder %s20, 0
      %p109 = por %p107, %p108
      %p110 = scmp.ne.s32.totalorder %s96, %s97
      %p111 = scmp.eq.s32.totalorder %s21, 1
      %p112 = por %p110, %p111
      %p114 = scmp.ne.s32.totalorder %s97, %s113
      %p115 = scmp.eq.s32.totalorder %s21, 0
      %p116 = por %p114, %p115
      %s117 = ssub.s32 %s15, %s22
      %p118 = scmp.eq.s32.totalorder %s117, 0
      %s120 = sadd.s32 %s119, 1
      %s121 = scalar_select %p118, %s119, %s120
      %p124 = pneg %p118
      %p125 = scmp.eq.s32.totalorder %s15, 1
      %p126 = por %p124, %p125
      %p127 = scmp.ne.s32.totalorder %s119, %s122
      %p128 = scmp.eq.s32.totalorder %s15, 0
      %p129 = por %p127, %p128
      %p130 = scmp.ne.s32.totalorder %s119, %s122
      %p131 = scmp.eq.s32.totalorder %s20, 1
      %p132 = por %p130, %p131
      %p133 = scmp.ne.s32.totalorder %s122, %s123
      %p134 = scmp.eq.s32.totalorder %s20, 0
      %p135 = por %p133, %p134
      %p136 = scmp.ne.s32.totalorder %s122, %s123
      %p137 = scmp.eq.s32.totalorder %s21, 1
      %p138 = por %p136, %p137
      %p140 = scmp.ne.s32.totalorder %s123, %s139
      %p141 = scmp.eq.s32.totalorder %s21, 0
      %p142 = por %p140, %p141
      %s143 = ssub.s32 %s15, %s22
      %p144 = scmp.eq.s32.totalorder %s143, 0
      %s146 = sadd.s32 %s145, 1
      %s147 = scalar_select %p144, %s145, %s146
      %p150 = pneg %p144
      %p151 = scmp.eq.s32.totalorder %s15, 1
      %p152 = por %p150, %p151
      %p153 = scmp.ne.s32.totalorder %s145, %s148
      %p154 = scmp.eq.s32.totalorder %s15, 0
      %p155 = por %p153, %p154
      %p156 = scmp.ne.s32.totalorder %s145, %s148
      %p157 = scmp.eq.s32.totalorder %s20, 1
      %p158 = por %p156, %p157
      %p159 = scmp.ne.s32.totalorder %s148, %s149
      %p160 = scmp.eq.s32.totalorder %s20, 0
      %p161 = por %p159, %p160
      %p162 = scmp.ne.s32.totalorder %s148, %s149
      %p163 = scmp.eq.s32.totalorder %s21, 1
      %p164 = por %p162, %p163
      %p166 = scmp.ne.s32.totalorder %s149, %s165
      %p167 = scmp.eq.s32.totalorder %s21, 0
      %p168 = por %p166, %p167
      %s169 = ssub.s32 %s15, %s22
      %p170 = scmp.eq.s32.totalorder %s169, 0
      %s172 = sadd.s32 %s171, 1
      %s173 = scalar_select %p170, %s171, %s172
      %p176 = pneg %p170
      %p177 = scmp.eq.s32.totalorder %s15, 1
      %p178 = por %p176, %p177
      %p179 = scmp.ne.s32.totalorder %s171, %s174
      %p180 = scmp.eq.s32.totalorder %s15, 0
      %p181 = por %p179, %p180
      %p182 = scmp.ne.s32.totalorder %s171, %s174
      %p183 = scmp.eq.s32.totalorder %s20, 1
      %p184 = por %p182, %p183
      %p185 = scmp.ne.s32.totalorder %s174, %s175
      %p186 = scmp.eq.s32.totalorder %s20, 0
      %p187 = por %p185, %p186
      %p188 = scmp.ne.s32.totalorder %s174, %s175
      %p189 = scmp.eq.s32.totalorder %s21, 1
      %p190 = por %p188, %p189
      %p192 = scmp.ne.s32.totalorder %s175, %s191
      %p193 = scmp.eq.s32.totalorder %s21, 0
      %p194 = por %p192, %p193
      %s195 = ssub.s32 %s15, %s22
      %p196 = scmp.eq.s32.totalorder %s195, 0
      %s198 = sadd.s32 %s197, 1
      %s199 = scalar_select %p196, %s197, %s198
      %p202 = pneg %p196
      %p203 = scmp.eq.s32.totalorder %s15, 1
      %p204 = por %p202, %p203
      %p205 = scmp.ne.s32.totalorder %s197, %s200
      %p206 = scmp.eq.s32.totalorder %s15, 0
      %p207 = por %p205, %p206
      %p208 = scmp.ne.s32.totalorder %s197, %s200
      %p209 = scmp.eq.s32.totalorder %s20, 1
      %p210 = por %p208, %p209
      %p211 = scmp.ne.s32.totalorder %s200, %s201
      %p212 = scmp.eq.s32.totalorder %s20, 0
      %p213 = por %p211, %p212
      %p214 = scmp.ne.s32.totalorder %s200, %s201
      %p215 = scmp.eq.s32.totalorder %s21, 1
      %p216 = por %p214, %p215
      %p218 = scmp.ne.s32.totalorder %s201, %s217
      %p219 = scmp.eq.s32.totalorder %s21, 0
      %p220 = por %p218, %p219
      %s222 = sadd.s32 %s221, 1
      %p225 = scmp.eq.s32.totalorder %s15, 1
      %p226 = scmp.ne.s32.totalorder %s221, %s223
      %p227 = scmp.eq.s32.totalorder %s15, 0
      %p228 = por %p226, %p227
      %p229 = scmp.ne.s32.totalorder %s221, %s223
      %p230 = scmp.eq.s32.totalorder %s20, 1
      %p231 = por %p229, %p230
      %p232 = scmp.ne.s32.totalorder %s223, %s224
      %p233 = scmp.eq.s32.totalorder %s20, 0
      %p234 = por %p232, %p233
      %p235 = scmp.ne.s32.totalorder %s223, %s224
      %p236 = scmp.eq.s32.totalorder %s21, 1
      %p237 = por %p235, %p236
      %p239 = scmp.ne.s32.totalorder %s224, %s238
      %p240 = scmp.eq.s32.totalorder %s21, 0
      %p241 = por %p239, %p240
      %p242 = scmp.le.s32.totalorder 1, %s15
      %p243 = scmp.lt.s32.totalorder %s15, 3
      %p244 = pnand %p242, %p243
      %p245 = pneg %p244
      // Predicated region
      $region9: #{tpu_custom_call.1} parent=5 // pred_check
        _
      $region10: #{tpu_custom_call.1} parent=5 // pred_check_branch
        %247 = sbr.rel (%p244) target = $region12
      $region11: #{tpu_custom_call.1} parent=5 // pred_region
        %s248 = ssub.s32 %s15, 1
        // Predicated region
        $region13: #{tpu_custom_call.1} parent=11 // pred_check
          %p249 = pneg %p36
        $region14: #{tpu_custom_call.1} parent=11 // pred_check_branch
          %251 = sbr.rel (%p249) target = $region16
        $region15: #{tpu_custom_call.1} parent=11 // pred_region
          _
        $region16: #{tpu_custom_call.1} parent=11 // pred_fallthru
          _
        // Predicated region
        $region17: #{tpu_custom_call.1} parent=11 // pred_check
          %p252 = pneg %p57
        $region18: #{tpu_custom_call.1} parent=11 // pred_check_branch
          %254 = sbr.rel (%p252) target = $region20
        $region19: #{tpu_custom_call.1} parent=11 // pred_region
          _
        $region20: #{tpu_custom_call.1} parent=11 // pred_fallthru
          _
      $region12: #{tpu_custom_call.1} parent=5 // pred_fallthru
        _
      %p255 = scmp.lt.s32.totalorder %s15, 2
      // Predicated region
      $region21: #{tpu_custom_call.1} parent=5 // pred_check
        %p256 = pneg %p255
      $region22: #{tpu_custom_call.1} parent=5 // pred_check_branch
        %258 = sbr.rel (%p256) target = $region24
      $region23: #{tpu_custom_call.1} parent=5 // pred_region
        // Predicated region
        $region25: #{tpu_custom_call.1} parent=23 // pred_check
          %p259 = pneg %p77
        $region26: #{tpu_custom_call.1} parent=23 // pred_check_branch
          %261 = sbr.rel (%p259) target = $region28
        $region27: #{tpu_custom_call.1} parent=23 // pred_region
          %p262 = scmp.lt.s32.totalorder %s15, 1
          %s263 = scalar_select %p262, %s15, 1
          %s264 = smul.addr %s263, 4
          %s265 = smul.addr %s264, 4
          %s266 = scalar_lea.vmem %s2, %s265
        $region28: #{tpu_custom_call.1} parent=23 // pred_fallthru
          _
        // Predicated region
        $region29: #{tpu_custom_call.1} parent=23 // pred_check
          %p267 = pneg %p103
        $region30: #{tpu_custom_call.1} parent=23 // pred_check_branch
          %269 = sbr.rel (%p267) target = $region32
        $region31: #{tpu_custom_call.1} parent=23 // pred_region
          %p270 = scmp.lt.s32.totalorder %s15, 1
          %s271 = scalar_select %p270, %s15, 1
          %s272 = smul.addr %s271, 4
          %s273 = smul.addr %s272, 4
          %s274 = scalar_lea.vmem %s3, %s273
        $region32: #{tpu_custom_call.1} parent=23 // pred_fallthru
          _
        // Predicated region
        $region33: #{tpu_custom_call.1} parent=23 // pred_check
          %p275 = pneg %p129
        $region34: #{tpu_custom_call.1} parent=23 // pred_check_branch
          %277 = sbr.rel (%p275) target = $region36
        $region35: #{tpu_custom_call.1} parent=23 // pred_region
          %p278 = scmp.lt.s32.totalorder %s15, 1
          %s279 = scalar_select %p278, %s15, 1
          %s280 = smul.addr %s279, 4
          %s281 = smul.addr %s280, 4
          %s282 = scalar_lea.vmem %s4, %s281
        $region36: #{tpu_custom_call.1} parent=23 // pred_fallthru
          _
        // Predicated region
        $region37: #{tpu_custom_call.1} parent=23 // pred_check
          %p283 = pneg %p155
        $region38: #{tpu_custom_call.1} parent=23 // pred_check_branch
          %285 = sbr.rel (%p283) target = $region40
        $region39: #{tpu_custom_call.1} parent=23 // pred_region
          %p286 = scmp.lt.s32.totalorder %s15, 1
          %s287 = scalar_select %p286, %s15, 1
          %s288 = smul.addr %s287, 8
          %s289 = smul.addr %s288, 4
          %s290 = scalar_lea.vmem %s5, %s289
        $region40: #{tpu_custom_call.1} parent=23 // pred_fallthru
          _
        // Predicated region
        $region41: #{tpu_custom_call.1} parent=23 // pred_check
          %p291 = pneg %p181
        $region42: #{tpu_custom_call.1} parent=23 // pred_check_branch
          %293 = sbr.rel (%p291) target = $region44
        $region43: #{tpu_custom_call.1} parent=23 // pred_region
          %p294 = scmp.lt.s32.totalorder %s15, 1
          %s295 = scalar_select %p294, %s15, 1
          %s296 = smul.addr %s295, 2
          %s297 = smul.addr %s296, 8
          %s298 = scalar_lea.vmem %s6, %s297
        $region44: #{tpu_custom_call.1} parent=23 // pred_fallthru
          _
        // Predicated region
        $region45: #{tpu_custom_call.1} parent=23 // pred_check
          %p299 = pneg %p207
        $region46: #{tpu_custom_call.1} parent=23 // pred_check_branch
          %301 = sbr.rel (%p299) target = $region48
        $region47: #{tpu_custom_call.1} parent=23 // pred_region
          %p302 = scmp.lt.s32.totalorder %s15, 1
          %s303 = scalar_select %p302, %s15, 1
          %s304 = scalar_lea.vmem %s7, %s303
        $region48: #{tpu_custom_call.1} parent=23 // pred_fallthru
          _
      $region24: #{tpu_custom_call.1} parent=5 // pred_fallthru
        _
      %p305 = scmp.le.s32.totalorder 1, %s15
      %p306 = scmp.lt.s32.totalorder %s15, 3
      %p307 = pnand %p305, %p306
      %p308 = pneg %p307
      // Predicated region
      $region49: #{tpu_custom_call.1} parent=5 // pred_check
        _
      $region50: #{tpu_custom_call.1} parent=5 // pred_check_branch
        %310 = sbr.rel (%p307) target = $region52
      $region51: #{tpu_custom_call.1} parent=5 // pred_region
        %s311 = ssub.s32 %s15, 1
        %p312 = pneg %p36
        %p313 = pneg %p33
        %p314 = pneg %p57
        %p315 = pneg %p54
        %p316 = scmp.lt.s32.totalorder %s20, 1
        %s317 = scalar_select %p316, %s20, 1
        %s318 = smul.addr %s317, 4
        %s319 = smul.addr %s318, 4
        %s320 = scalar_lea.vmem %s2, %s319
        %p321 = pneg %p83
        %p322 = pneg %p80
        %p323 = scmp.lt.s32.totalorder %s20, 1
        %s324 = scalar_select %p323, %s20, 1
        %s325 = smul.addr %s324, 4
        %s326 = smul.addr %s325, 4
        %s327 = scalar_lea.vmem %s3, %s326
        %p328 = pneg %p109
        %p329 = pneg %p106
        %p330 = scmp.lt.s32.totalorder %s20, 1
        %s331 = scalar_select %p330, %s20, 1
        %s332 = smul.addr %s331, 4
        %s333 = smul.addr %s332, 4
        %s334 = scalar_lea.vmem %s4, %s333
        %p335 = pneg %p135
        %p336 = pneg %p132
        %p337 = scmp.lt.s32.totalorder %s20, 1
        %s338 = scalar_select %p337, %s20, 1
        %s339 = smul.addr %s338, 8
        %s340 = smul.addr %s339, 4
        %s341 = scalar_lea.vmem %s5, %s340
        %p342 = pneg %p161
        %p343 = pneg %p158
        %p344 = scmp.lt.s32.totalorder %s20, 1
        %s345 = scalar_select %p344, %s20, 1
        %s346 = smul.addr %s345, 2
        %s347 = smul.addr %s346, 8
        %s348 = scalar_lea.vmem %s6, %s347
        %p349 = pneg %p187
        %p350 = pneg %p184
        %p351 = scmp.lt.s32.totalorder %s20, 1
        %s352 = scalar_select %p351, %s20, 1
        %s353 = scalar_lea.vmem %s7, %s352
        %p354 = pneg %p213
        %p355 = pneg %p210
        %p356 = pneg %p234
        %p357 = pneg %p231
        %p358 = scmp.lt.s32.totalorder %s20, 1
        %s359 = scalar_select %p358, %s20, 1
        %s360 = smul.addr %s359, 4
        %s361 = smul.addr %s360, 4
        %s362 = scalar_lea.vmem %s2, %s361
        %p363 = scmp.lt.s32.totalorder %s20, 1
        %s364 = scalar_select %p363, %s20, 1
        %s365 = smul.addr %s364, 4
        %s366 = smul.addr %s365, 4
        %s367 = scalar_lea.vmem %s3, %s366
        %p368 = scmp.lt.s32.totalorder %s20, 1
        %s369 = scalar_select %p368, %s20, 1
        %s370 = smul.addr %s369, 4
        %s371 = smul.addr %s370, 4
        %s372 = scalar_lea.vmem %s4, %s371
        %p373 = scmp.lt.s32.totalorder %s20, 1
        %s374 = scalar_select %p373, %s20, 1
        %s375 = smul.addr %s374, 8
        %s376 = smul.addr %s375, 4
        %s377 = scalar_lea.vmem %s5, %s376
        %p378 = scmp.lt.s32.totalorder %s20, 1
        %s379 = scalar_select %p378, %s20, 1
        %s380 = smul.addr %s379, 2
        %s381 = smul.addr %s380, 8
        %s382 = scalar_lea.vmem %s6, %s381
        %p383 = scmp.lt.s32.totalorder %s20, 1
        %s384 = scalar_select %p383, %s20, 1
        %s385 = scalar_lea.vmem %s7, %s384
        %p387 = scmp.eq.s32.totalorder %s20, 0
        // Predicated region
        $region53: #{tpu_custom_call.1} parent=51 // pred_check
          %p388 = pneg %p387
        $region54: #{tpu_custom_call.1} parent=51 // pred_check_branch
          %390 = sbr.rel (%p388) target = $region56
        $region55: #{tpu_custom_call.1} parent=51 // pred_region
          %v391 = vld [vmem:[%s0] sm:$0xff]
          %v392 = vld [vmem:[%s0 + $0x8] sm:$0xff]
          %vm393 = vcmask 261120
          %394 = vst.msk [vmem:[#allocation2] sm:$0xff] %vm393, %v391
          %395 = vst.msk [vmem:[#allocation2 + $0x8] sm:$0xff] %vm393, %v392
        $region56: #{tpu_custom_call.1} parent=51 // pred_fallthru
          _
        %v396 = vld [vmem:[#allocation2] sm:$0xff]
        %v397 = vld [vmem:[#allocation2 + $0x8] sm:$0xff]
        %v398 = vld [vmem:[%s362] sm:$0xf]
        %v399 = vld [vmem:[%s362 + $0x4] sm:$0xf]
        %v400 = vld [vmem:[%s362 + $0x8] sm:$0xf]
        %v401 = vld [vmem:[%s362 + $0xc] sm:$0xf]
        %v402 = vld [vmem:[%s367] sm:$0xf]
        %v403 = vld [vmem:[%s367 + $0x4] sm:$0xf]
        %v404 = vld [vmem:[%s367 + $0x8] sm:$0xf]
        %v405 = vld [vmem:[%s367 + $0xc] sm:$0xf]
        %v406 = vld [vmem:[%s372] sm:$0xf]
        %v407 = vld [vmem:[%s372 + $0x4] sm:$0xf]
        %v408 = vld [vmem:[%s372 + $0x8] sm:$0xf]
        %v409 = vld [vmem:[%s372 + $0xc] sm:$0xf]
        %v410 = vld [vmem:[%s377] sm:$0xf]
        %v411 = vld [vmem:[%s377 + $0x4] sm:$0xf]
        %v412 = vld [vmem:[%s377 + $0x8] sm:$0xf]
        %v413 = vld [vmem:[%s377 + $0xc] sm:$0xf]
        %v414 = vld [vmem:[%s377 + $0x10] sm:$0xf]
        %v415 = vld [vmem:[%s377 + $0x14] sm:$0xf]
        %v416 = vld [vmem:[%s377 + $0x18] sm:$0xf]
        %v417 = vld [vmem:[%s377 + $0x1c] sm:$0xf]
        %v418 = vld [vmem:[%s382] sm:$0xff]
        %v419 = vld [vmem:[%s382 + $0x8] sm:$0x1]
        %v420 = vld [vmem:[%s385] sm:$0x1]
        %v421 = vpack.c.bf16 %v397, %v396
        %v426 = vunpack.c.l.b16 %v398
        %v427 = vunpack.c.l.b16 %v399
        %v428 = vunpack.c.l.b16 %v400
        %v429 = vunpack.c.l.b16 %v401
        %v430 = vpack.c.b16 %v427, %v426
        %v431 = vpack.c.b16 %v429, %v428
        %vm434 = vcmask 261120
        %v436 = vsel %vm434, %v421, 0
        %438 = vmatpush.bf16.msra.mxu0 0
        %439 = vmatpush.bf16.msra.mxu0 0
        %440 = vmatpush.bf16.msra.mxu0 0
        %441 = vmatpush.bf16.msra.mxu0 0
        %442 = vmatpush.bf16.msra.mxu0 0
        %443 = vmatpush.bf16.msra.mxu0 0
        %444 = vmatpush.bf16.msra.mxu0 %v431
        %445 = vmatpush.bf16.msra.mxu0 %v430
        %446 = vmatmul.bf16.gmra.mxu0 %v436
        %v447 = vpop.f32.mrf.mxu0
        %v448 = vadd.f32 0.0, %v447
        %v449 = vpop.f32.mrf.mxu0
        %v450 = vadd.f32 0.0, %v449
        %451 = vdwg.mxu0
        %v452 = vperm.slane %v418, 0
        %v453 = vadd.f32 %v448, %v452
        %v454 = vadd.f32 %v450, %v452
        %v455 = vperm.slane %v418, 1
        %457 = vrot.lane.b32.xlu0 %v455, 32
        %v458 = vpop.permute.xlu0 %457
        %v460 = vadd.f32 %v448, %v458
        %v461 = vadd.f32 %v450, %v458
        %v462 = vperm.slane %v418, 2
        %464 = vrot.lane.b32.xlu0 %v462, 64
        %v465 = vpop.permute.xlu0 %464
        %v467 = vadd.f32 %v448, %v465
        %v468 = vadd.f32 %v450, %v465
        %471 = vrot.lane.b32.xlu0 %v453, 120
        %v472 = vpop.permute.xlu0 %471
        %473 = vrot.lane.b32.xlu0 %v454, 120
        %v474 = vpop.permute.xlu0 %473
        %477 = vrot.lane.b32.xlu0 %v453, 112
        %v478 = vpop.permute.xlu0 %477
        %479 = vrot.lane.b32.xlu0 %v454, 112
        %v480 = vpop.permute.xlu0 %479
        %483 = vrot.lane.b32.xlu0 %v453, 104
        %v484 = vpop.permute.xlu0 %483
        %485 = vrot.lane.b32.xlu0 %v454, 104
        %v486 = vpop.permute.xlu0 %485
        %v489 = vpack.c.bf16 %v453, %v453
        %v490 = vpack.c.bf16 %v454, %v454
        %v491 = vpack.c.bf16 %v472, %v472
        %v492 = vpack.c.bf16 %v474, %v474
        %v493 = vpack.c.bf16 %v478, %v478
        %v494 = vpack.c.bf16 %v480, %v480
        %v495 = vpack.c.bf16 %v484, %v484
        %v496 = vpack.c.bf16 %v486, %v486
        %499 = vrot.lane.b32.xlu0 %v460, 120
        %v500 = vpop.permute.xlu0 %499
        %501 = vrot.lane.b32.xlu0 %v461, 120
        %v502 = vpop.permute.xlu0 %501
        %505 = vrot.lane.b32.xlu0 %v460, 112
        %v506 = vpop.permute.xlu0 %505
        %507 = vrot.lane.b32.xlu0 %v461, 112
        %v508 = vpop.permute.xlu0 %507
        %511 = vrot.lane.b32.xlu0 %v460, 104
        %v512 = vpop.permute.xlu0 %511
        %513 = vrot.lane.b32.xlu0 %v461, 104
        %v514 = vpop.permute.xlu0 %513
        %v517 = vpack.c.bf16 %v460, %v460
        %v518 = vpack.c.bf16 %v461, %v461
        %v519 = vpack.c.bf16 %v500, %v500
        %v520 = vpack.c.bf16 %v502, %v502
        %v521 = vpack.c.bf16 %v506, %v506
        %v522 = vpack.c.bf16 %v508, %v508
        %v523 = vpack.c.bf16 %v512, %v512
        %v524 = vpack.c.bf16 %v514, %v514
        %527 = vrot.lane.b32.xlu0 %v467, 120
        %v528 = vpop.permute.xlu0 %527
        %529 = vrot.lane.b32.xlu0 %v468, 120
        %v530 = vpop.permute.xlu0 %529
        %533 = vrot.lane.b32.xlu0 %v467, 112
        %v534 = vpop.permute.xlu0 %533
        %535 = vrot.lane.b32.xlu0 %v468, 112
        %v536 = vpop.permute.xlu0 %535
        %539 = vrot.lane.b32.xlu0 %v467, 104
        %v540 = vpop.permute.xlu0 %539
        %541 = vrot.lane.b32.xlu0 %v468, 104
        %v542 = vpop.permute.xlu0 %541
        %v545 = vpack.c.bf16 %v467, %v467
        %v546 = vpack.c.bf16 %v468, %v468
        %v547 = vpack.c.bf16 %v528, %v528
        %v548 = vpack.c.bf16 %v530, %v530
        %v549 = vpack.c.bf16 %v534, %v534
        %v550 = vpack.c.bf16 %v536, %v536
        %v551 = vpack.c.bf16 %v540, %v540
        %v552 = vpack.c.bf16 %v542, %v542
        %v553 = vld [vmem:[%s1] sm:$0x3]
        %v554 = vsub.f32 1.0, %v553
        %v555 = vmul.f32 %v554, -10000.0
        %v557 = vrot.slane %v555, 1
        %v558 = vperm.slane %v555, 0
        %v559 = vperm.slane %v557, 0
        %v563 = vunpack.c.l.b16 %v517
        %v564 = vpack.c.b16 %v563, %v563
        %565 = vrot.lane.b32.xlu0 %v564, 96
        %v566 = vpop.permute.xlu0 %565
        %vm567 = vcmask 64512
        %v569 = vsel %vm567, %v489, 0
        %v572 = vsel %vm567, %v566, 0
        %574 = vmatpush.bf16.xpose.msra.mxu0 0
        %575 = vmatpush.bf16.xpose.msra.mxu0 0
        %576 = vmatpush.bf16.xpose.msra.mxu0 0
        %577 = vmatpush.bf16.xpose.msra.mxu0 0
        %578 = vmatpush.bf16.xpose.msra.mxu0 0
        %579 = vmatpush.bf16.xpose.msra.mxu0 0
        %580 = vmatpush.bf16.xpose.msra.mxu0 0
        %581 = vmatpush.bf16.xpose.msra.mxu0 %v572
        %582 = vmatmul.bf16.gmra.mxu0 %v569
        %v583 = vpop.f32.mrf.mxu0
        %v584 = vadd.f32 %v558, %v583
        %v585 = vpop.f32.mrf.mxu0
        %586 = vdwg.mxu0
        %v588 = vunpack.c.l.b16 %v518
        %v589 = vpack.c.b16 %v588, %v588
        %590 = vrot.lane.b32.xlu0 %v589, 96
        %v591 = vpop.permute.xlu0 %590
        %v593 = vsel %vm567, %v490, 0
        %v596 = vsel %vm567, %v591, 0
        %598 = vmatpush.bf16.xpose.msra.mxu0 0
        %599 = vmatpush.bf16.xpose.msra.mxu0 0
        %600 = vmatpush.bf16.xpose.msra.mxu0 0
        %601 = vmatpush.bf16.xpose.msra.mxu0 0
        %602 = vmatpush.bf16.xpose.msra.mxu0 0
        %603 = vmatpush.bf16.xpose.msra.mxu0 0
        %604 = vmatpush.bf16.xpose.msra.mxu0 0
        %605 = vmatpush.bf16.xpose.msra.mxu0 %v596
        %606 = vmatmul.bf16.gmra.mxu0 %v593
        %v607 = vpop.f32.mrf.mxu0
        %v608 = vadd.f32 %v559, %v607
        %v609 = vpop.f32.mrf.mxu0
        %610 = vdwg.mxu0
        %v612 = vunpack.c.l.b16 %v519
        %v613 = vpack.c.b16 %v612, %v612
        %614 = vrot.lane.b32.xlu0 %v613, 96
        %v615 = vpop.permute.xlu0 %614
        %v617 = vsel %vm567, %v491, 0
        %v620 = vsel %vm567, %v615, 0
        %622 = vmatpush.bf16.xpose.msra.mxu0 0
        %623 = vmatpush.bf16.xpose.msra.mxu0 0
        %624 = vmatpush.bf16.xpose.msra.mxu0 0
        %625 = vmatpush.bf16.xpose.msra.mxu0 0
        %626 = vmatpush.bf16.xpose.msra.mxu0 0
        %627 = vmatpush.bf16.xpose.msra.mxu0 0
        %628 = vmatpush.bf16.xpose.msra.mxu0 0
        %629 = vmatpush.bf16.xpose.msra.mxu0 %v620
        %630 = vmatmul.bf16.gmra.mxu0 %v617
        %v631 = vpop.f32.mrf.mxu0
        %v632 = vadd.f32 %v558, %v631
        %v633 = vpop.f32.mrf.mxu0
        %634 = vdwg.mxu0
        %v636 = vunpack.c.l.b16 %v520
        %v637 = vpack.c.b16 %v636, %v636
        %638 = vrot.lane.b32.xlu0 %v637, 96
        %v639 = vpop.permute.xlu0 %638
        %v641 = vsel %vm567, %v492, 0
        %v644 = vsel %vm567, %v639, 0
        %646 = vmatpush.bf16.xpose.msra.mxu0 0
        %647 = vmatpush.bf16.xpose.msra.mxu0 0
        %648 = vmatpush.bf16.xpose.msra.mxu0 0
        %649 = vmatpush.bf16.xpose.msra.mxu0 0
        %650 = vmatpush.bf16.xpose.msra.mxu0 0
        %651 = vmatpush.bf16.xpose.msra.mxu0 0
        %652 = vmatpush.bf16.xpose.msra.mxu0 0
        %653 = vmatpush.bf16.xpose.msra.mxu0 %v644
        %654 = vmatmul.bf16.gmra.mxu0 %v641
        %v655 = vpop.f32.mrf.mxu0
        %v656 = vadd.f32 %v559, %v655
        %v657 = vpop.f32.mrf.mxu0
        %658 = vdwg.mxu0
        %v660 = vunpack.c.l.b16 %v521
        %v661 = vpack.c.b16 %v660, %v660
        %662 = vrot.lane.b32.xlu0 %v661, 96
        %v663 = vpop.permute.xlu0 %662
        %v665 = vsel %vm567, %v493, 0
        %v668 = vsel %vm567, %v663, 0
        %670 = vmatpush.bf16.xpose.msra.mxu0 0
        %671 = vmatpush.bf16.xpose.msra.mxu0 0
        %672 = vmatpush.bf16.xpose.msra.mxu0 0
        %673 = vmatpush.bf16.xpose.msra.mxu0 0
        %674 = vmatpush.bf16.xpose.msra.mxu0 0
        %675 = vmatpush.bf16.xpose.msra.mxu0 0
        %676 = vmatpush.bf16.xpose.msra.mxu0 0
        %677 = vmatpush.bf16.xpose.msra.mxu0 %v668
        %678 = vmatmul.bf16.gmra.mxu0 %v665
        %v679 = vpop.f32.mrf.mxu0
        %v680 = vadd.f32 %v558, %v679
        %v681 = vpop.f32.mrf.mxu0
        %682 = vdwg.mxu0
        %v684 = vunpack.c.l.b16 %v522
        %v685 = vpack.c.b16 %v684, %v684
        %686 = vrot.lane.b32.xlu0 %v685, 96
        %v687 = vpop.permute.xlu0 %686
        %v689 = vsel %vm567, %v494, 0
        %v692 = vsel %vm567, %v687, 0
        %694 = vmatpush.bf16.xpose.msra.mxu0 0
        %695 = vmatpush.bf16.xpose.msra.mxu0 0
        %696 = vmatpush.bf16.xpose.msra.mxu0 0
        %697 = vmatpush.bf16.xpose.msra.mxu0 0
        %698 = vmatpush.bf16.xpose.msra.mxu0 0
        %699 = vmatpush.bf16.xpose.msra.mxu0 0
        %700 = vmatpush.bf16.xpose.msra.mxu0 0
        %701 = vmatpush.bf16.xpose.msra.mxu0 %v692
        %702 = vmatmul.bf16.gmra.mxu0 %v689
        %v703 = vpop.f32.mrf.mxu0
        %v704 = vadd.f32 %v559, %v703
        %v705 = vpop.f32.mrf.mxu0
        %706 = vdwg.mxu0
        %v708 = vunpack.c.l.b16 %v523
        %v709 = vpack.c.b16 %v708, %v708
        %710 = vrot.lane.b32.xlu0 %v709, 96
        %v711 = vpop.permute.xlu0 %710
        %v713 = vsel %vm567, %v495, 0
        %v716 = vsel %vm567, %v711, 0
        %718 = vmatpush.bf16.xpose.msra.mxu0 0
        %719 = vmatpush.bf16.xpose.msra.mxu0 0
        %720 = vmatpush.bf16.xpose.msra.mxu0 0
        %721 = vmatpush.bf16.xpose.msra.mxu0 0
        %722 = vmatpush.bf16.xpose.msra.mxu0 0
        %723 = vmatpush.bf16.xpose.msra.mxu0 0
        %724 = vmatpush.bf16.xpose.msra.mxu0 0
        %725 = vmatpush.bf16.xpose.msra.mxu0 %v716
        %726 = vmatmul.bf16.gmra.mxu0 %v713
        %v727 = vpop.f32.mrf.mxu0
        %v728 = vadd.f32 %v558, %v727
        %v729 = vpop.f32.mrf.mxu0
        %730 = vdwg.mxu0
        %v732 = vunpack.c.l.b16 %v524
        %v733 = vpack.c.b16 %v732, %v732
        %734 = vrot.lane.b32.xlu0 %v733, 96
        %v735 = vpop.permute.xlu0 %734
        %v737 = vsel %vm567, %v496, 0
        %v740 = vsel %vm567, %v735, 0
        %742 = vmatpush.bf16.xpose.msra.mxu0 0
        %743 = vmatpush.bf16.xpose.msra.mxu0 0
        %744 = vmatpush.bf16.xpose.msra.mxu0 0
        %745 = vmatpush.bf16.xpose.msra.mxu0 0
        %746 = vmatpush.bf16.xpose.msra.mxu0 0
        %747 = vmatpush.bf16.xpose.msra.mxu0 0
        %748 = vmatpush.bf16.xpose.msra.mxu0 0
        %749 = vmatpush.bf16.xpose.msra.mxu0 %v740
        %750 = vmatmul.bf16.gmra.mxu0 %v737
        %v751 = vpop.f32.mrf.mxu0
        %v752 = vadd.f32 %v559, %v751
        %v753 = vpop.f32.mrf.mxu0
        %754 = vdwg.mxu0
        %v755 = vsel %vm567, %v584, -inf
        %756 = vmax.xlane.f32.xlu0 %v755
        %v757 = vpop.xlane.xlu0 %756
        %v758 = vsel %vm567, %v608, -inf
        %759 = vmax.xlane.f32.xlu0 %v758
        %v760 = vpop.xlane.xlu0 %759
        %v761 = vsel %vm567, %v632, -inf
        %762 = vmax.xlane.f32.xlu0 %v761
        %v763 = vpop.xlane.xlu0 %762
        %v764 = vsel %vm567, %v656, -inf
        %765 = vmax.xlane.f32.xlu0 %v764
        %v766 = vpop.xlane.xlu0 %765
        %v767 = vsel %vm567, %v680, -inf
        %768 = vmax.xlane.f32.xlu0 %v767
        %v769 = vpop.xlane.xlu0 %768
        %v770 = vsel %vm567, %v704, -inf
        %771 = vmax.xlane.f32.xlu0 %v770
        %v772 = vpop.xlane.xlu0 %771
        %v773 = vsel %vm567, %v728, -inf
        %774 = vmax.xlane.f32.xlu0 %v773
        %v775 = vpop.xlane.xlu0 %774
        %v776 = vsel %vm567, %v752, -inf
        %777 = vmax.xlane.f32.xlu0 %v776
        %v778 = vpop.xlane.xlu0 %777
        %v779 = vsub.f32 %v584, %v757
        %v780 = vsub.f32 %v608, %v760
        %v781 = vsub.f32 %v632, %v763
        %v782 = vsub.f32 %v656, %v766
        %v783 = vsub.f32 %v680, %v769
        %v784 = vsub.f32 %v704, %v772
        %v785 = vsub.f32 %v728, %v775
        %v786 = vsub.f32 %v752, %v778
        %v787 = vmul.f32 %v779, 1.442695
        %v788 = vpow.pop %v787
        %v789 = vmul.f32 %v780, 1.442695
        %v790 = vpow.pop %v789
        %v791 = vmul.f32 %v781, 1.442695
        %v792 = vpow.pop %v791
        %v793 = vmul.f32 %v782, 1.442695
        %v794 = vpow.pop %v793
        %v795 = vmul.f32 %v783, 1.442695
        %v796 = vpow.pop %v795
        %v797 = vmul.f32 %v784, 1.442695
        %v798 = vpow.pop %v797
        %v799 = vmul.f32 %v785, 1.442695
        %v800 = vpow.pop %v799
        %v801 = vmul.f32 %v786, 1.442695
        %v802 = vpow.pop %v801
        %v803 = vsel %vm567, %v788, 0.0
        %804 = vadd.xlane.f32.xlu0 %v803
        %v805 = vpop.xlane.xlu0 %804
        %v806 = vsel %vm567, %v790, 0.0
        %807 = vadd.xlane.f32.xlu0 %v806
        %v808 = vpop.xlane.xlu0 %807
        %v809 = vsel %vm567, %v792, 0.0
        %810 = vadd.xlane.f32.xlu0 %v809
        %v811 = vpop.xlane.xlu0 %810
        %v812 = vsel %vm567, %v794, 0.0
        %813 = vadd.xlane.f32.xlu0 %v812
        %v814 = vpop.xlane.xlu0 %813
        %v815 = vsel %vm567, %v796, 0.0
        %816 = vadd.xlane.f32.xlu0 %v815
        %v817 = vpop.xlane.xlu0 %816
        %v818 = vsel %vm567, %v798, 0.0
        %819 = vadd.xlane.f32.xlu0 %v818
        %v820 = vpop.xlane.xlu0 %819
        %v821 = vsel %vm567, %v800, 0.0
        %822 = vadd.xlane.f32.xlu0 %v821
        %v823 = vpop.xlane.xlu0 %822
        %v824 = vsel %vm567, %v802, 0.0
        %825 = vadd.xlane.f32.xlu0 %v824
        %v826 = vpop.xlane.xlu0 %825
        %v827 = vrcp.pop %v805
        %v828 = vmul.f32 %v805, %v827
        %v829 = vsub.f32 1.0, %v828
        %v830 = vmul.f32 %v827, %v829
        %v831 = vadd.f32 %v827, %v830
        %vm832 = vweird.f32 %v805
        %vm833 = vweird.f32 %v827
        %vm834 = vmor %vm832, %vm833
        %v835 = vsel %vm834, %v827, %v831
        %v836 = vand.u32 2147483647, %v805
        %vm837 = vcmp.eq.f32.partialorder %v836, 8.507059e+37
        %v838 = vand.u32 %v805, 2147483648
        %v839 = vor.u32 1.1754944e-38, %v838
        %v840 = vsel %vm837, %v839, %v835
        %v841 = vrcp.pop %v808
        %v842 = vmul.f32 %v808, %v841
        %v843 = vsub.f32 1.0, %v842
        %v844 = vmul.f32 %v841, %v843
        %v845 = vadd.f32 %v841, %v844
        %vm846 = vweird.f32 %v808
        %vm847 = vweird.f32 %v841
        %vm848 = vmor %vm846, %vm847
        %v849 = vsel %vm848, %v841, %v845
        %v850 = vand.u32 2147483647, %v808
        %vm851 = vcmp.eq.f32.partialorder %v850, 8.507059e+37
        %v852 = vand.u32 %v808, 2147483648
        %v853 = vor.u32 1.1754944e-38, %v852
        %v854 = vsel %vm851, %v853, %v849
        %v855 = vrcp.pop %v811
        %v856 = vmul.f32 %v811, %v855
        %v857 = vsub.f32 1.0, %v856
        %v858 = vmul.f32 %v855, %v857
        %v859 = vadd.f32 %v855, %v858
        %vm860 = vweird.f32 %v811
        %vm861 = vweird.f32 %v855
        %vm862 = vmor %vm860, %vm861
        %v863 = vsel %vm862, %v855, %v859
        %v864 = vand.u32 2147483647, %v811
        %vm865 = vcmp.eq.f32.partialorder %v864, 8.507059e+37
        %v866 = vand.u32 %v811, 2147483648
        %v867 = vor.u32 1.1754944e-38, %v866
        %v868 = vsel %vm865, %v867, %v863
        %v869 = vrcp.pop %v814
        %v870 = vmul.f32 %v814, %v869
        %v871 = vsub.f32 1.0, %v870
        %v872 = vmul.f32 %v869, %v871
        %v873 = vadd.f32 %v869, %v872
        %vm874 = vweird.f32 %v814
        %vm875 = vweird.f32 %v869
        %vm876 = vmor %vm874, %vm875
        %v877 = vsel %vm876, %v869, %v873
        %v878 = vand.u32 2147483647, %v814
        %vm879 = vcmp.eq.f32.partialorder %v878, 8.507059e+37
        %v880 = vand.u32 %v814, 2147483648
        %v881 = vor.u32 1.1754944e-38, %v880
        %v882 = vsel %vm879, %v881, %v877
        %v883 = vrcp.pop %v817
        %v884 = vmul.f32 %v817, %v883
        %v885 = vsub.f32 1.0, %v884
        %v886 = vmul.f32 %v883, %v885
        %v887 = vadd.f32 %v883, %v886
        %vm888 = vweird.f32 %v817
        %vm889 = vweird.f32 %v883
        %vm890 = vmor %vm888, %vm889
        %v891 = vsel %vm890, %v883, %v887
        %v892 = vand.u32 2147483647, %v817
        %vm893 = vcmp.eq.f32.partialorder %v892, 8.507059e+37
        %v894 = vand.u32 %v817, 2147483648
        %v895 = vor.u32 1.1754944e-38, %v894
        %v896 = vsel %vm893, %v895, %v891
        %v897 = vrcp.pop %v820
        %v898 = vmul.f32 %v820, %v897
        %v899 = vsub.f32 1.0, %v898
        %v900 = vmul.f32 %v897, %v899
        %v901 = vadd.f32 %v897, %v900
        %vm902 = vweird.f32 %v820
        %vm903 = vweird.f32 %v897
        %vm904 = vmor %vm902, %vm903
        %v905 = vsel %vm904, %v897, %v901
        %v906 = vand.u32 2147483647, %v820
        %vm907 = vcmp.eq.f32.partialorder %v906, 8.507059e+37
        %v908 = vand.u32 %v820, 2147483648
        %v909 = vor.u32 1.1754944e-38, %v908
        %v910 = vsel %vm907, %v909, %v905
        %v911 = vrcp.pop %v823
        %v912 = vmul.f32 %v823, %v911
        %v913 = vsub.f32 1.0, %v912
        %v914 = vmul.f32 %v911, %v913
        %v915 = vadd.f32 %v911, %v914
        %vm916 = vweird.f32 %v823
        %vm917 = vweird.f32 %v911
        %vm918 = vmor %vm916, %vm917
        %v919 = vsel %vm918, %v911, %v915
        %v920 = vand.u32 2147483647, %v823
        %vm921 = vcmp.eq.f32.partialorder %v920, 8.507059e+37
        %v922 = vand.u32 %v823, 2147483648
        %v923 = vor.u32 1.1754944e-38, %v922
        %v924 = vsel %vm921, %v923, %v919
        %v925 = vrcp.pop %v826
        %v926 = vmul.f32 %v826, %v925
        %v927 = vsub.f32 1.0, %v926
        %v928 = vmul.f32 %v925, %v927
        %v929 = vadd.f32 %v925, %v928
        %vm930 = vweird.f32 %v826
        %vm931 = vweird.f32 %v925
        %vm932 = vmor %vm930, %vm931
        %v933 = vsel %vm932, %v925, %v929
        %v934 = vand.u32 2147483647, %v826
        %vm935 = vcmp.eq.f32.partialorder %v934, 8.507059e+37
        %v936 = vand.u32 %v826, 2147483648
        %v937 = vor.u32 1.1754944e-38, %v936
        %v938 = vsel %vm935, %v937, %v933
        %v939 = vmul.f32 %v788, %v840
        %v940 = vmul.f32 %v790, %v854
        %v941 = vmul.f32 %v792, %v868
        %v942 = vmul.f32 %v794, %v882
        %v943 = vmul.f32 %v796, %v896
        %v944 = vmul.f32 %v798, %v910
        %v945 = vmul.f32 %v800, %v924
        %v946 = vmul.f32 %v802, %v938
        %v947 = vpack.c.bf16 %v939, %v939
        %v948 = vpack.c.bf16 %v940, %v940
        %v949 = vpack.c.bf16 %v941, %v941
        %v950 = vpack.c.bf16 %v942, %v942
        %v951 = vpack.c.bf16 %v943, %v943
        %v952 = vpack.c.bf16 %v944, %v944
        %v953 = vpack.c.bf16 %v945, %v945
        %v954 = vpack.c.bf16 %v946, %v946
        %v956 = vunpack.c.l.b16 %v545
        %v957 = vpack.c.b16 %v956, %v956
        %958 = vrot.lane.b32.xlu0 %v957, 64
        %v959 = vpop.permute.xlu0 %958
        %v961 = vsel %vm567, %v947, 0
        %vm963 = vcmask 1043456
        %v965 = vsel %vm963, %v959, 0
        %967 = vmatpush.bf16.msra.mxu0 0
        %968 = vmatpush.bf16.msra.mxu0 0
        %969 = vmatpush.bf16.msra.mxu0 0
        %970 = vmatpush.bf16.msra.mxu0 0
        %971 = vmatpush.bf16.msra.mxu0 0
        %972 = vmatpush.bf16.msra.mxu0 0
        %973 = vmatpush.bf16.msra.mxu0 0
        %974 = vmatpush.bf16.msra.mxu0 %v965
        %975 = vmatmul.bf16.gmra.mxu0 %v961
        %v976 = vpop.f32.mrf.mxu0
        %v977 = vadd.f32 0.0, %v976
        %v978 = vpop.f32.mrf.mxu0
        %979 = vdwg.mxu0
        %v981 = vunpack.c.l.b16 %v546
        %v982 = vpack.c.b16 %v981, %v981
        %983 = vrot.lane.b32.xlu0 %v982, 64
        %v984 = vpop.permute.xlu0 %983
        %v986 = vsel %vm567, %v948, 0
        %v989 = vsel %vm963, %v984, 0
        %991 = vmatpush.bf16.msra.mxu0 0
        %992 = vmatpush.bf16.msra.mxu0 0
        %993 = vmatpush.bf16.msra.mxu0 0
        %994 = vmatpush.bf16.msra.mxu0 0
        %995 = vmatpush.bf16.msra.mxu0 0
        %996 = vmatpush.bf16.msra.mxu0 0
        %997 = vmatpush.bf16.msra.mxu0 0
        %998 = vmatpush.bf16.msra.mxu0 %v989
        %999 = vmatmul.bf16.gmra.mxu0 %v986
        %v1000 = vpop.f32.mrf.mxu0
        %v1001 = vadd.f32 0.0, %v1000
        %v1002 = vpop.f32.mrf.mxu0
        %1003 = vdwg.mxu0
        %v1005 = vunpack.c.l.b16 %v547
        %v1006 = vpack.c.b16 %v1005, %v1005
        %1007 = vrot.lane.b32.xlu0 %v1006, 64
        %v1008 = vpop.permute.xlu0 %1007
        %v1010 = vsel %vm567, %v949, 0
        %v1013 = vsel %vm963, %v1008, 0
        %1015 = vmatpush.bf16.msra.mxu0 0
        %1016 = vmatpush.bf16.msra.mxu0 0
        %1017 = vmatpush.bf16.msra.mxu0 0
        %1018 = vmatpush.bf16.msra.mxu0 0
        %1019 = vmatpush.bf16.msra.mxu0 0
        %1020 = vmatpush.bf16.msra.mxu0 0
        %1021 = vmatpush.bf16.msra.mxu0 0
        %1022 = vmatpush.bf16.msra.mxu0 %v1013
        %1023 = vmatmul.bf16.gmra.mxu0 %v1010
        %v1024 = vpop.f32.mrf.mxu0
        %v1025 = vadd.f32 0.0, %v1024
        %v1026 = vpop.f32.mrf.mxu0
        %1027 = vdwg.mxu0
        %v1029 = vunpack.c.l.b16 %v548
        %v1030 = vpack.c.b16 %v1029, %v1029
        %1031 = vrot.lane.b32.xlu0 %v1030, 64
        %v1032 = vpop.permute.xlu0 %1031
        %v1034 = vsel %vm567, %v950, 0
        %v1037 = vsel %vm963, %v1032, 0
        %1039 = vmatpush.bf16.msra.mxu0 0
        %1040 = vmatpush.bf16.msra.mxu0 0
        %1041 = vmatpush.bf16.msra.mxu0 0
        %1042 = vmatpush.bf16.msra.mxu0 0
        %1043 = vmatpush.bf16.msra.mxu0 0
        %1044 = vmatpush.bf16.msra.mxu0 0
        %1045 = vmatpush.bf16.msra.mxu0 0
        %1046 = vmatpush.bf16.msra.mxu0 %v1037
        %1047 = vmatmul.bf16.gmra.mxu0 %v1034
        %v1048 = vpop.f32.mrf.mxu0
        %v1049 = vadd.f32 0.0, %v1048
        %v1050 = vpop.f32.mrf.mxu0
        %1051 = vdwg.mxu0
        %v1053 = vunpack.c.l.b16 %v549
        %v1054 = vpack.c.b16 %v1053, %v1053
        %1055 = vrot.lane.b32.xlu0 %v1054, 64
        %v1056 = vpop.permute.xlu0 %1055
        %v1058 = vsel %vm567, %v951, 0
        %v1061 = vsel %vm963, %v1056, 0
        %1063 = vmatpush.bf16.msra.mxu0 0
        %1064 = vmatpush.bf16.msra.mxu0 0
        %1065 = vmatpush.bf16.msra.mxu0 0
        %1066 = vmatpush.bf16.msra.mxu0 0
        %1067 = vmatpush.bf16.msra.mxu0 0
        %1068 = vmatpush.bf16.msra.mxu0 0
        %1069 = vmatpush.bf16.msra.mxu0 0
        %1070 = vmatpush.bf16.msra.mxu0 %v1061
        %1071 = vmatmul.bf16.gmra.mxu0 %v1058
        %v1072 = vpop.f32.mrf.mxu0
        %v1073 = vadd.f32 0.0, %v1072
        %v1074 = vpop.f32.mrf.mxu0
        %1075 = vdwg.mxu0
        %v1077 = vunpack.c.l.b16 %v550
        %v1078 = vpack.c.b16 %v1077, %v1077
        %1079 = vrot.lane.b32.xlu0 %v1078, 64
        %v1080 = vpop.permute.xlu0 %1079
        %v1082 = vsel %vm567, %v952, 0
        %v1085 = vsel %vm963, %v1080, 0
        %1087 = vmatpush.bf16.msra.mxu0 0
        %1088 = vmatpush.bf16.msra.mxu0 0
        %1089 = vmatpush.bf16.msra.mxu0 0
        %1090 = vmatpush.bf16.msra.mxu0 0
        %1091 = vmatpush.bf16.msra.mxu0 0
        %1092 = vmatpush.bf16.msra.mxu0 0
        %1093 = vmatpush.bf16.msra.mxu0 0
        %1094 = vmatpush.bf16.msra.mxu0 %v1085
        %1095 = vmatmul.bf16.gmra.mxu0 %v1082
        %v1096 = vpop.f32.mrf.mxu0
        %v1097 = vadd.f32 0.0, %v1096
        %v1098 = vpop.f32.mrf.mxu0
        %1099 = vdwg.mxu0
        %v1101 = vunpack.c.l.b16 %v551
        %v1102 = vpack.c.b16 %v1101, %v1101
        %1103 = vrot.lane.b32.xlu0 %v1102, 64
        %v1104 = vpop.permute.xlu0 %1103
        %v1106 = vsel %vm567, %v953, 0
        %v1109 = vsel %vm963, %v1104, 0
        %1111 = vmatpush.bf16.msra.mxu0 0
        %1112 = vmatpush.bf16.msra.mxu0 0
        %1113 = vmatpush.bf16.msra.mxu0 0
        %1114 = vmatpush.bf16.msra.mxu0 0
        %1115 = vmatpush.bf16.msra.mxu0 0
        %1116 = vmatpush.bf16.msra.mxu0 0
        %1117 = vmatpush.bf16.msra.mxu0 0
        %1118 = vmatpush.bf16.msra.mxu0 %v1109
        %1119 = vmatmul.bf16.gmra.mxu0 %v1106
        %v1120 = vpop.f32.mrf.mxu0
        %v1121 = vadd.f32 0.0, %v1120
        %v1122 = vpop.f32.mrf.mxu0
        %1123 = vdwg.mxu0
        %v1125 = vunpack.c.l.b16 %v552
        %v1126 = vpack.c.b16 %v1125, %v1125
        %1127 = vrot.lane.b32.xlu0 %v1126, 64
        %v1128 = vpop.permute.xlu0 %1127
        %v1130 = vsel %vm567, %v954, 0
        %v1133 = vsel %vm963, %v1128, 0
        %1135 = vmatpush.bf16.msra.mxu0 0
        %1136 = vmatpush.bf16.msra.mxu0 0
        %1137 = vmatpush.bf16.msra.mxu0 0
        %1138 = vmatpush.bf16.msra.mxu0 0
        %1139 = vmatpush.bf16.msra.mxu0 0
        %1140 = vmatpush.bf16.msra.mxu0 0
        %1141 = vmatpush.bf16.msra.mxu0 0
        %1142 = vmatpush.bf16.msra.mxu0 %v1133
        %1143 = vmatmul.bf16.gmra.mxu0 %v1130
        %v1144 = vpop.f32.mrf.mxu0
        %v1145 = vadd.f32 0.0, %v1144
        %v1146 = vpop.f32.mrf.mxu0
        %1147 = vdwg.mxu0
        %1150 = vrot.lane.b32.xlu0 %v1025, 8
        %v1151 = vpop.permute.xlu0 %1150
        %1152 = vrot.lane.b32.xlu0 %v1049, 8
        %v1153 = vpop.permute.xlu0 %1152
        %1158 = vrot.lane.b32.xlu0 %v1073, 16
        %v1159 = vpop.permute.xlu0 %1158
        %1160 = vrot.lane.b32.xlu0 %v1097, 16
        %v1161 = vpop.permute.xlu0 %1160
        %1166 = vrot.lane.b32.xlu0 %v1121, 24
        %v1167 = vpop.permute.xlu0 %1166
        %1168 = vrot.lane.b32.xlu0 %v1145, 24
        %v1169 = vpop.permute.xlu0 %1168
        %v1172 = vsel %vm567, %v977, %v1151
        %v1173 = vsel %vm567, %v1001, %v1153
        %vm1174 = vcmask 130048
        %v1175 = vsel %vm1174, %v1172, %v1159
        %v1176 = vsel %vm1174, %v1173, %v1161
        %vm1177 = vcmask 195584
        %v1178 = vsel %vm1177, %v1175, %v1167
        %v1179 = vsel %vm1177, %v1176, %v1169
        %v1180 = vpack.c.bf16 %v1179, %v1178
        %v1181 = vperm.slane %v418, 3
        %v1186 = vunpack.c.l.b16 %v402
        %v1187 = vunpack.c.l.b16 %v403
        %v1188 = vunpack.c.l.b16 %v404
        %v1189 = vunpack.c.l.b16 %v405
        %v1190 = vpack.c.b16 %v1187, %v1186
        %v1191 = vpack.c.b16 %v1189, %v1188
        %v1195 = vsel %vm434, %v1180, 0
        %1197 = vmatpush.bf16.msra.mxu0 0
        %1198 = vmatpush.bf16.msra.mxu0 0
        %1199 = vmatpush.bf16.msra.mxu0 0
        %1200 = vmatpush.bf16.msra.mxu0 0
        %1201 = vmatpush.bf16.msra.mxu0 0
        %1202 = vmatpush.bf16.msra.mxu0 0
        %1203 = vmatpush.bf16.msra.mxu0 %v1191
        %1204 = vmatpush.bf16.msra.mxu0 %v1190
        %1205 = vmatmul.bf16.gmra.mxu0 %v1195
        %v1206 = vpop.f32.mrf.mxu0
        %v1207 = vadd.f32 %v1181, %v1206
        %v1208 = vpop.f32.mrf.mxu0
        %v1209 = vadd.f32 %v1181, %v1208
        %1210 = vdwg.mxu0
        %v1211 = vadd.f32 %v1207, %v396
        %v1212 = vadd.f32 %v1209, %v397
        %v1213 = vsel %vm434, %v1211, 0.0
        %1214 = vadd.xlane.f32.xlu0 %v1213
        %v1215 = vpop.xlane.xlu0 %1214
        %v1216 = vsel %vm434, %v1212, 0.0
        %1217 = vadd.xlane.f32.xlu0 %v1216
        %v1218 = vpop.xlane.xlu0 %1217
        %v1219 = vrcp.pop 32.0
        %v1220 = vmul.f32 32.0, %v1219
        %v1221 = vsub.f32 1.0, %v1220
        %v1222 = vmul.f32 %v1219, %v1221
        %v1223 = vadd.f32 %v1219, %v1222
        %vm1224 = vweird.f32 %v1219
        %v1225 = vsel %vm1224, %v1219, %v1223
        %v1226 = vmul.f32 %v1215, %v1225
        %v1227 = vmul.f32 %v1218, %v1225
        %v1228 = vsub.f32 %v1211, %v1226
        %v1229 = vsub.f32 %v1212, %v1227
        %v1230 = vmul.f32 %v1228, %v1228
        %v1231 = vmul.f32 %v1229, %v1229
        %v1232 = vsel %vm434, %v1230, 0.0
        %1233 = vadd.xlane.f32.xlu0 %v1232
        %v1234 = vpop.xlane.xlu0 %1233
        %v1235 = vsel %vm434, %v1231, 0.0
        %1236 = vadd.xlane.f32.xlu0 %v1235
        %v1237 = vpop.xlane.xlu0 %1236
        %v1238 = vmul.f32 %v1234, %v1225
        %v1239 = vmul.f32 %v1237, %v1225
        %v1240 = vadd.f32 %v1238, 1e-12
        %v1241 = vadd.f32 %v1239, 1e-12
        %v1242 = vrsqrt.pop %v1240
        %v1243 = vmul.f32 %v1242, %v1240
        %v1244 = vmul.f32 %v1243, %v1242
        %v1245 = vmul.f32 0.5, %v1244
        %v1246 = vsub.f32 1.5, %v1245
        %v1247 = vmul.f32 %v1242, %v1246
        %vm1248 = vweird.f32 %v1240
        %vm1249 = vweird.f32 %v1242
        %vm1250 = vmor %vm1248, %vm1249
        %v1251 = vsel %vm1250, %v1242, %v1247
        %v1252 = vrsqrt.pop %v1241
        %v1253 = vmul.f32 %v1252, %v1241
        %v1254 = vmul.f32 %v1253, %v1252
        %v1255 = vmul.f32 0.5, %v1254
        %v1256 = vsub.f32 1.5, %v1255
        %v1257 = vmul.f32 %v1252, %v1256
        %vm1258 = vweird.f32 %v1241
        %vm1259 = vweird.f32 %v1252
        %vm1260 = vmor %vm1258, %vm1259
        %v1261 = vsel %vm1260, %v1252, %v1257
        %v1262 = vmul.f32 %v1228, %v1251
        %v1263 = vmul.f32 %v1229, %v1261
        %v1264 = vperm.slane %v418, 4
        %v1265 = vmul.f32 %v1262, %v1264
        %v1266 = vmul.f32 %v1263, %v1264
        %v1267 = vperm.slane %v418, 5
        %v1268 = vadd.f32 %v1265, %v1267
        %v1269 = vadd.f32 %v1266, %v1267
        %v1270 = vpack.c.bf16 %v1269, %v1268
        %v1272 = vperm.slane %v420, 0
        %v1278 = vunpack.c.l.b16 %v406
        %v1279 = vunpack.c.l.b16 %v407
        %v1280 = vunpack.c.l.b16 %v408
        %v1281 = vunpack.c.l.b16 %v409
        %v1282 = vpack.c.b16 %v1279, %v1278
        %v1283 = vpack.c.b16 %v1281, %v1280
        %v1287 = vsel %vm434, %v1270, 0
        %1289 = vmatpush.bf16.msra.mxu0 0
        %1290 = vmatpush.bf16.msra.mxu0 0
        %1291 = vmatpush.bf16.msra.mxu0 0
        %1292 = vmatpush.bf16.msra.mxu0 0
        %1293 = vmatpush.bf16.msra.mxu0 0
        %1294 = vmatpush.bf16.msra.mxu0 0
        %1295 = vmatpush.bf16.msra.mxu0 %v1283
        %1296 = vmatpush.bf16.msra.mxu0 %v1282
        %1297 = vmatmul.bf16.gmra.mxu0 %v1287
        %v1298 = vpop.f32.mrf.mxu0
        %v1299 = vadd.f32 %v1272, %v1298
        %v1300 = vpop.f32.mrf.mxu0
        %v1301 = vadd.f32 %v1272, %v1300
        %1302 = vdwg.mxu0
        %v1303 = vmul.f32 %v1299, 0.5
        %v1304 = vmul.f32 %v1301, 0.5
        %v1305 = vmul.f32 %v1299, 0.70710677
        %v1306 = vmul.f32 %v1301, 0.70710677
        %v1307 = vmul.f32 %v1305, %v1305
        %v1308 = vmin.f32 16.0, %v1307
        %v1309 = vmul.f32 %v1308, 2.1237322e-06
        %v1310 = vadd.f32 %v1309, 0.00028619796
        %v1311 = vmul.f32 %v1308, %v1310
        %v1312 = vadd.f32 %v1311, 0.0036580483
        %v1313 = vmul.f32 %v1308, %v1312
        %v1314 = vadd.f32 %v1313, 0.05243302
        %v1315 = vmul.f32 %v1308, %v1314
        %v1316 = vadd.f32 %v1315, 0.18741608
        %v1317 = vmul.f32 %v1308, %v1316
        %v1318 = vadd.f32 %v1317, 1.1283791
        %v1319 = vmul.f32 %v1305, %v1318
        %v1320 = vmul.f32 %v1308, 3.8918573e-05
        %v1321 = vadd.f32 %v1320, 0.001143296
        %v1322 = vmul.f32 %v1308, %v1321
        %v1323 = vadd.f32 %v1322, 0.014752088
        %v1324 = vmul.f32 %v1308, %v1323
        %v1325 = vadd.f32 %v1324, 0.112945676
        %v1326 = vmul.f32 %v1308, %v1325
        %v1327 = vadd.f32 %v1326, 0.4994258
        %v1328 = vmul.f32 %v1308, %v1327
        %v1329 = vadd.f32 %v1328, 1.0
        %v1330 = vrcp.pop %v1329
        %v1331 = vmul.f32 %v1329, %v1330
        %v1332 = vsub.f32 1.0, %v1331
        %v1333 = vmul.f32 %v1330, %v1332
        %v1334 = vadd.f32 %v1330, %v1333
        %vm1335 = vweird.f32 %v1329
        %vm1336 = vweird.f32 %v1330
        %vm1337 = vmor %vm1335, %vm1336
        %v1338 = vsel %vm1337, %v1330, %v1334
        %v1339 = vand.u32 2147483647, %v1329
        %vm1340 = vcmp.eq.f32.partialorder %v1339, 8.507059e+37
        %v1341 = vand.u32 %v1329, 2147483648
        %v1342 = vor.u32 1.1754944e-38, %v1341
        %v1343 = vsel %vm1340, %v1342, %v1338
        %v1344 = vmul.f32 %v1319, %v1343
        %v1345 = vmin.f32 %v1344, 1.0
        %v1346 = vmax.f32 %v1345, -1.0
        %v1347 = vmul.f32 %v1306, %v1306
        %v1348 = vmin.f32 16.0, %v1347
        %v1349 = vmul.f32 %v1348, 2.1237322e-06
        %v1350 = vadd.f32 %v1349, 0.00028619796
        %v1351 = vmul.f32 %v1348, %v1350
        %v1352 = vadd.f32 %v1351, 0.0036580483
        %v1353 = vmul.f32 %v1348, %v1352
        %v1354 = vadd.f32 %v1353, 0.05243302
        %v1355 = vmul.f32 %v1348, %v1354
        %v1356 = vadd.f32 %v1355, 0.18741608
        %v1357 = vmul.f32 %v1348, %v1356
        %v1358 = vadd.f32 %v1357, 1.1283791
        %v1359 = vmul.f32 %v1306, %v1358
        %v1360 = vmul.f32 %v1348, 3.8918573e-05
        %v1361 = vadd.f32 %v1360, 0.001143296
        %v1362 = vmul.f32 %v1348, %v1361
        %v1363 = vadd.f32 %v1362, 0.014752088
        %v1364 = vmul.f32 %v1348, %v1363
        %v1365 = vadd.f32 %v1364, 0.112945676
        %v1366 = vmul.f32 %v1348, %v1365
        %v1367 = vadd.f32 %v1366, 0.4994258
        %v1368 = vmul.f32 %v1348, %v1367
        %v1369 = vadd.f32 %v1368, 1.0
        %v1370 = vrcp.pop %v1369
        %v1371 = vmul.f32 %v1369, %v1370
        %v1372 = vsub.f32 1.0, %v1371
        %v1373 = vmul.f32 %v1370, %v1372
        %v1374 = vadd.f32 %v1370, %v1373
        %vm1375 = vweird.f32 %v1369
        %vm1376 = vweird.f32 %v1370
        %vm1377 = vmor %vm1375, %vm1376
        %v1378 = vsel %vm1377, %v1370, %v1374
        %v1379 = vand.u32 2147483647, %v1369
        %vm1380 = vcmp.eq.f32.partialorder %v1379, 8.507059e+37
        %v1381 = vand.u32 %v1369, 2147483648
        %v1382 = vor.u32 1.1754944e-38, %v1381
        %v1383 = vsel %vm1380, %v1382, %v1378
        %v1384 = vmul.f32 %v1359, %v1383
        %v1385 = vmin.f32 %v1384, 1.0
        %v1386 = vmax.f32 %v1385, -1.0
        %v1387 = vadd.f32 %v1346, 1.0
        %v1388 = vadd.f32 %v1386, 1.0
        %v1389 = vmul.f32 %v1303, %v1387
        %v1390 = vmul.f32 %v1304, %v1388
        %v1391 = vpack.c.bf16 %v1390, %v1389
        %v1392 = vperm.slane %v418, 6
        %v1401 = vunpack.c.l.b16 %v410
        %v1402 = vunpack.c.l.b16 %v411
        %v1403 = vunpack.c.l.b16 %v412
        %v1404 = vunpack.c.l.b16 %v413
        %v1405 = vunpack.c.l.b16 %v414
        %v1406 = vunpack.c.l.b16 %v415
        %v1407 = vunpack.c.l.b16 %v416
        %v1408 = vunpack.c.l.b16 %v417
        %v1409 = vpack.c.b16 %v1402, %v1401
        %v1410 = vpack.c.b16 %v1404, %v1403
        %v1411 = vpack.c.b16 %v1406, %v1405
        %v1412 = vpack.c.b16 %v1408, %v1407
        %vm1417 = vcmask 523264
        %v1419 = vsel %vm1417, %v1391, 0
        %1421 = vmatpush.bf16.msra.mxu0 0
        %1422 = vmatpush.bf16.msra.mxu0 0
        %1423 = vmatpush.bf16.msra.mxu0 0
        %1424 = vmatpush.bf16.msra.mxu0 0
        %1425 = vmatpush.bf16.msra.mxu0 %v1412
        %1426 = vmatpush.bf16.msra.mxu0 %v1411
        %1427 = vmatpush.bf16.msra.mxu0 %v1410
        %1428 = vmatpush.bf16.msra.mxu0 %v1409
        %1429 = vmatmul.bf16.gmra.mxu0 %v1419
        %v1430 = vpop.f32.mrf.mxu0
        %v1431 = vadd.f32 %v1392, %v1430
        %v1432 = vpop.f32.mrf.mxu0
        %v1433 = vadd.f32 %v1392, %v1432
        %1434 = vdwg.mxu0
        %v1435 = vadd.f32 %v1431, %v1268
        %v1436 = vadd.f32 %v1433, %v1269
        %v1437 = vsel %vm434, %v1435, 0.0
        %1438 = vadd.xlane.f32.xlu0 %v1437
        %v1439 = vpop.xlane.xlu0 %1438
        %v1440 = vsel %vm434, %v1436, 0.0
        %1441 = vadd.xlane.f32.xlu0 %v1440
        %v1442 = vpop.xlane.xlu0 %1441
        %v1443 = vmul.f32 %v1439, %v1225
        %v1444 = vmul.f32 %v1442, %v1225
        %v1445 = vsub.f32 %v1435, %v1443
        %v1446 = vsub.f32 %v1436, %v1444
        %v1447 = vmul.f32 %v1445, %v1445
        %v1448 = vmul.f32 %v1446, %v1446
        %v1449 = vsel %vm434, %v1447, 0.0
        %1450 = vadd.xlane.f32.xlu0 %v1449
        %v1451 = vpop.xlane.xlu0 %1450
        %v1452 = vsel %vm434, %v1448, 0.0
        %1453 = vadd.xlane.f32.xlu0 %v1452
        %v1454 = vpop.xlane.xlu0 %1453
        %v1455 = vmul.f32 %v1451, %v1225
        %v1456 = vmul.f32 %v1454, %v1225
        %v1457 = vadd.f32 %v1455, 1e-12
        %v1458 = vadd.f32 %v1456, 1e-12
        %v1459 = vrsqrt.pop %v1457
        %v1460 = vmul.f32 %v1459, %v1457
        %v1461 = vmul.f32 %v1460, %v1459
        %v1462 = vmul.f32 0.5, %v1461
        %v1463 = vsub.f32 1.5, %v1462
        %v1464 = vmul.f32 %v1459, %v1463
        %vm1465 = vweird.f32 %v1457
        %vm1466 = vweird.f32 %v1459
        %vm1467 = vmor %vm1465, %vm1466
        %v1468 = vsel %vm1467, %v1459, %v1464
        %v1469 = vrsqrt.pop %v1458
        %v1470 = vmul.f32 %v1469, %v1458
        %v1471 = vmul.f32 %v1470, %v1469
        %v1472 = vmul.f32 0.5, %v1471
        %v1473 = vsub.f32 1.5, %v1472
        %v1474 = vmul.f32 %v1469, %v1473
        %vm1475 = vweird.f32 %v1458
        %vm1476 = vweird.f32 %v1469
        %vm1477 = vmor %vm1475, %vm1476
        %v1478 = vsel %vm1477, %v1469, %v1474
        %v1479 = vmul.f32 %v1445, %v1468
        %v1480 = vmul.f32 %v1446, %v1478
        %v1481 = vperm.slane %v418, 7
        %v1482 = vmul.f32 %v1479, %v1481
        %v1483 = vmul.f32 %v1480, %v1481
        %v1484 = vperm.slane %v419, 0
        %v1485 = vadd.f32 %v1482, %v1484
        %v1486 = vadd.f32 %v1483, %v1484
        %1487 = vst.msk [vmem:[#allocation2] sm:$0xff] %vm434, %v1485
        %1488 = vst.msk [vmem:[#allocation2 + $0x8] sm:$0xff] %vm434, %v1486
        %p1489 = scmp.eq.s32.totalorder %s20, 1
        // Predicated region
        $region57: #{tpu_custom_call.1} parent=51 // pred_check
          %p1490 = pneg %p1489
        $region58: #{tpu_custom_call.1} parent=51 // pred_check_branch
          %1492 = sbr.rel (%p1490) target = $region60
        $region59: #{tpu_custom_call.1} parent=51 // pred_region
          %1493 = vst.msk [vmem:[#allocation3] sm:$0xff] %vm434, %v1485
          %1494 = vst.msk [vmem:[#allocation3 + $0x8] sm:$0xff] %vm434, %v1486
        $region60: #{tpu_custom_call.1} parent=51 // pred_fallthru
          _
        // Predicated region
        $region61: #{tpu_custom_call.1} parent=51 // pred_check
          %p1495 = pneg %p231
        $region62: #{tpu_custom_call.1} parent=51 // pred_check_branch
          %1497 = sbr.rel (%p1495) target = $region64
        $region63: #{tpu_custom_call.1} parent=51 // pred_region
          %1499 = vsyncadd [#allocation4], 0
          %s1500 = sshll.u32 [#allocation3], 4
          %s1501 = int_to_ptr.vmem [resolvable:$true] %s1500
          %s1502 = sshll.u32 %s8, 4
          %s1503 = int_to_ptr.hbm [resolvable:$true] %s1502
          %1508 = dma.vmem_to_hbm [thread:$0]  %s1501, 256, %s1503, [#allocation4], 128, 128, 8
        $region64: #{tpu_custom_call.1} parent=51 // pred_fallthru
          _
        // Predicated region
        $region65: #{tpu_custom_call.1} parent=51 // pred_check
          %p1509 = pneg %p231
        $region66: #{tpu_custom_call.1} parent=51 // pred_check_branch
          %1511 = sbr.rel (%p1509) target = $region68
        $region67: #{tpu_custom_call.1} parent=51 // pred_region
          %1513 = dma.done [#allocation4], 256
        $region68: #{tpu_custom_call.1} parent=51 // pred_fallthru
          _
      $region52: #{tpu_custom_call.1} parent=5 // pred_fallthru
        _
      %p1514 = scmp.le.s32.totalorder 2, %s15
      // Predicated region
      $region69: #{tpu_custom_call.1} parent=5 // pred_check
        %p1515 = pneg %p1514
      $region70: #{tpu_custom_call.1} parent=5 // pred_check_branch
        %1517 = sbr.rel (%p1515) target = $region72
      $region71: #{tpu_custom_call.1} parent=5 // pred_region
        %s1518 = ssub.s32 %s15, 2
      $region72: #{tpu_custom_call.1} parent=5 // pred_fallthru
        _
    $region6: #{tpu_custom_call.1} parent=1 // loop_footer
      %s19 = sadd.s32 1, %s15
    $region7: #{tpu_custom_call.1} parent=1 // loop_footer_branch
      %14 = sbr.rel target = $region3
    $region8: #{tpu_custom_call.1} parent=1 // loop_exit
      _
    %1519 = vsyncpa [#allocation4], 1
    %s1520 = scalar_lea.sflag [#allocation4], 1
    %1521 = vsyncpa %s1520, 1

</llo_original>
